<compile_context>
chip_gen: v6e
topology: v6e:2x2x1
jax: 0.10.0
libtpu: 0.0.40
codegen_flags: <defaults>
</compile_context>

<pallas_src>
import functools
import math

import jax
import jax.numpy as jnp
from jax.experimental import pallas as pl
from jax.experimental.pallas import tpu as pltpu


def _choose_tj(n, d, d_head, budget_bytes=20 * 1024 * 1024):
    """Largest lane-dense j-tile under a VMEM budget (and MXU-inflation cap)."""
    feas = [t for t in range(1, n + 1)
            if n % t == 0 and (t * d) % 128 == 0 and (t * d_head) % 128 == 0]
    if not feas:
        return n  # single full-width tile (full-dim blocks are always legal)

    def footprint(t):
        return (2 * 4 * n * t * d                 # e stream, f32, double buffered
                + 2 * 2 * n * t * d_head          # e_out stream (bf16)
                + 10 * 4 * n * t * d_head         # residents + f32 temporaries
                + 2 * 2 * t * d * t * d_head)     # block-diagonal edge weight

    # t*d_head <= 512 keeps the kron(I, We) MXU inflation memory-bound on v5e too.
    good = [t for t in feas if t * d_head <= 512 and footprint(t) <= budget_bytes]
    return max(good) if good else min(feas)


def head_attention_kernel(e_ref, qt_ref, nit_ref, kf_ref, njf_ref, v_ref,
                          mcol_ref, mrow_ref, mrep_ref,
                          wbd_ref, bew_ref, sseg_ref,
                          xo_ref, eo_ref, *, tj):
    j = pl.program_id(1)
    last_j = pl.num_programs(1) - 1

    @pl.when(j == 0)
    def _init():
        xo_ref[0] = jnp.zeros(xo_ref.shape[1:], xo_ref.dtype)

    m = mcol_ref[0]            # (N, 1)       node mask, i axis
    mj = mrow_ref[0, 0]        # (1, TJ)      node mask, this j tile
    mrep = mrep_ref[0, 0]      # (1, TJ*DH)   same, repeated DH times per node

    # ---- edge projection for this column block, directly in wide layout ----
    e_blk = e_ref[0].astype(jnp.bfloat16)                       # (N, TJ*D)
    E = jnp.dot(e_blk, wbd_ref[...],
                preferred_element_type=jnp.float32) + bew_ref[...]  # (N, TJ*DH)

    kf = kf_ref[0, pl.ds(j, 1), :]     # (1, TJ*DH)  masked K rows, flattened
    njf = njf_ref[0, pl.ds(j, 1), :]   # (1, TJ*DH)  raw Nj rows, flattened

    e_pre = nit_ref[0] + njf + E       # (N, TJ*DH)  = Ni + Nj + E (unmasked)

    # ---- attention scores ----------------------------------------------------
    # Att[i, j] = sum_h Q[i,h] * (Ni+Nj+E)[i,j,h] * K[j,h]
    # mask_i, mask_j and 1/sqrt(d_head) are folded into q_tiled / k_flat, so the
    # segmented lane-sum (small MXU matmul with kron(I, ones)) gives Att exactly.
    att_wide = qt_ref[0] * kf * e_pre                               # (N, TJ*DH)
    att = jnp.dot(att_wide, sseg_ref[...],
                  preferred_element_type=jnp.float32)               # (N, TJ)

    mm = m * mj                                                     # (N, TJ)
    att = jnp.where(mm != 0.0, att, jnp.float32(-1e9))

    # softmax over the i axis (torch dim=1); exact — full i axis is resident.
    att_max = jnp.max(att, axis=0, keepdims=True)
    p = jnp.exp(att - att_max)
    denom = jnp.sum(p, axis=0, keepdims=True)
    att_sm = p * pl.reciprocal(denom, approx=True)
    # drop_att has p=0.0 -> identity at inference; nothing to do.

    # ---- outputs -------------------------------------------------------------
    j0 = pl.multiple_of(j * tj, tj)
    vj = v_ref[0, pl.ds(j0, tj), :]                                 # (TJ, DH)
    xo_ref[0] = xo_ref[0] + jnp.dot(att_sm, vj,
                                    preferred_element_type=jnp.float32)

    # e_out = (Ni + Nj + E) * mask_i * mask_j, stored lane-dense.
    eo_ref[0] = (e_pre * (m * mrep)).astype(eo_ref.dtype)

    @pl.when(j == last_j)
    def _finish():
        xo_ref[0] = xo_ref[0] * m          # final x_mask on the node output


def head_attention_pallas(x, e, node_mask, params, *, tj=None,
                          edge_out_dtype=jnp.bfloat16):
    B, N, D = x.shape
    DH = params["wq"].shape[1]

    if tj is None:
        tj = _choose_tj(N, D, DH)
    if N % tj != 0:
        raise ValueError(f"tj={tj} must divide N={N}")
    if tj != N and ((tj * D) % 128 != 0 or (tj * DH) % 128 != 0):
        raise ValueError("tj*D and tj*DH must be multiples of 128 (or tj == N)")
    J = N // tj
    TJD = tj * DH

    f32 = jnp.float32
    x = x.astype(f32)
    mask = node_mask.astype(f32)
    xm = mask[..., None]
    inv_sqrt = 1.0 / math.sqrt(DH)

    def lin(t, w, b):
        return t @ w.astype(f32) + b.astype(f32)

    # Node projections are O(N*D*DH) — negligible next to the O(N^2*D) edge
    # stream — so compute them here and hand the kernel every node-side operand
    # already in the wide lane-dense layout (zero in-kernel relayouts).
    Q = lin(x, params["wq"], params["bq"]) * (xm * inv_sqrt)   # mask_i, scale folded
    K = lin(x, params["wk"], params["bk"]) * xm                # mask_j folded
    V = lin(x, params["wv"], params["bv"]) * xm
    Ni = lin(x, params["wni"], params["bni"])                  # raw
    Nj = lin(x, params["wnj"], params["bnj"])                  # raw

    q_tiled = jnp.tile(Q, (1, 1, tj))                          # (B, N, TJ*DH)
    ni_tiled = jnp.tile(Ni, (1, 1, tj))                        # (B, N, TJ*DH)
    k_flat = K.reshape(B, J, TJD)                              # (B, J, TJ*DH)
    nj_flat = Nj.reshape(B, J, TJD)                            # (B, J, TJ*DH)

    if e.dtype not in (jnp.float32, jnp.bfloat16):
        e = e.astype(f32)
    e_wide = e.reshape(B, N, N * D)                            # free reshape

    m_col = mask.reshape(B, N, 1)
    m_row = mask.reshape(B, J, 1, tj)
    m_rep = jnp.repeat(mask, DH, axis=-1).reshape(B, J, 1, TJD)

    # Block-diagonal edge weight (wide-layout projection) and segment-sum matrix.
    we_bd = jnp.kron(jnp.eye(tj, dtype=f32),
                     params["we"].astype(f32)).astype(jnp.bfloat16)   # (TJ*D, TJ*DH)
    be_wide = jnp.tile(params["be"].astype(f32), (1, tj))             # (1, TJ*DH)
    s_seg = jnp.kron(jnp.eye(tj, dtype=f32), jnp.ones((DH, 1), f32))  # (TJ*DH, TJ)

    in_specs = [
        pl.BlockSpec((1, N, tj * D), lambda b, j: (b, 0, j)),      # e (streamed)
        pl.BlockSpec((1, N, TJD),    lambda b, j: (b, 0, 0)),      # q_tiled
        pl.BlockSpec((1, N, TJD),    lambda b, j: (b, 0, 0)),      # ni_tiled
        pl.BlockSpec((1, J, TJD),    lambda b, j: (b, 0, 0)),      # k_flat
        pl.BlockSpec((1, J, TJD),    lambda b, j: (b, 0, 0)),      # nj_flat
        pl.BlockSpec((1, N, DH),     lambda b, j: (b, 0, 0)),      # V
        pl.BlockSpec((1, N, 1),      lambda b, j: (b, 0, 0)),      # mask column
        pl.BlockSpec((1, 1, 1, tj),  lambda b, j: (b, j, 0, 0)),   # mask row tile
        pl.BlockSpec((1, 1, 1, TJD), lambda b, j: (b, j, 0, 0)),   # mask row, repeated
        pl.BlockSpec((tj * D, TJD),  lambda b, j: (0, 0)),         # block-diag We
        pl.BlockSpec((1, TJD),       lambda b, j: (0, 0)),         # tiled be
        pl.BlockSpec((TJD, tj),      lambda b, j: (0, 0)),         # segment-sum
    ]
    out_specs = (
        pl.BlockSpec((1, N, DH),  lambda b, j: (b, 0, 0)),         # x_out (acc over j)
        pl.BlockSpec((1, N, TJD), lambda b, j: (b, 0, j)),         # e_out (wide)
    )
    out_shape = (
        jax.ShapeDtypeStruct((B, N, DH), jnp.float32),
        jax.ShapeDtypeStruct((B, N, N * DH), edge_out_dtype),
    )

    # Rough per-step VMEM footprint; only raise the scoped limit when needed.
    out_isize = jnp.dtype(edge_out_dtype).itemsize
    e_isize = jnp.dtype(e_wide.dtype).itemsize
    est = (2 * e_isize * N * tj * D            # e stream, double buffered
           + 2 * out_isize * N * TJD           # e_out stream, double buffered
           + 4 * 4 * N * TJD                   # q_tiled / ni_tiled residents
           + 2 * 2 * tj * D * TJD              # block-diag weight (bf16)
           + 6 * 4 * N * TJD                   # f32 temporaries
           + 4 * N * (D + 4 * DH + 8))         # small residents
    vmem_limit = None
    if est > 12 * 1024 * 1024:
        vmem_limit = min(int(est * 1.5), 64 * 1024 * 1024)

    kernel = functools.partial(head_attention_kernel, tj=tj)
    x_out, e_out_wide = pl.pallas_call(
        kernel,
        grid=(B, J),
        in_specs=in_specs,
        out_specs=out_specs,
        out_shape=out_shape,
        compiler_params=pltpu.CompilerParams(
            dimension_semantics=("parallel", "arbitrary"),
            vmem_limit_bytes=vmem_limit),
    )(e_wide, q_tiled, ni_tiled, k_flat, nj_flat, V,
      m_col, m_row, m_rep, we_bd, be_wide, s_seg)

    return x_out, e_out_wide.reshape(B, N, N, DH)


def head_attention_ref(x, e, node_mask, params):
    """Pure-JAX reference mirroring the PyTorch forward exactly (all f32)."""
    x_mask = node_mask[..., None]                 # (B, N, 1)
    m1 = x_mask[:, :, None, :]                    # (B, N, 1, 1)
    m2 = x_mask[:, None, :, :]                    # (B, 1, N, 1)

    def lin(t, w, b):
        return t @ w + b[0]

    Q = lin(x, params["wq"], params["bq"]) * x_mask
    K = lin(x, params["wk"], params["bk"]) * x_mask
    V = lin(x, params["wv"], params["bv"]) * x_mask
    E = lin(e, params["we"], params["be"]) * m1 * m2
    Ni = lin(x, params["wni"], params["bni"])[:, :, None, :] * m1
    Nj = lin(x, params["wnj"], params["bnj"])[:, None, :, :] * m2
    e_out = (Ni + Nj + E) * m1 * m2

    dh = params["wq"].shape[1]
    Att = (Q[:, :, None, :] * e_out * K[:, None, :, :]).sum(-1) / jnp.sqrt(
        jnp.float32(dh))
    att_mask = node_mask[:, None, :] * node_mask[:, :, None]
    Att = jnp.where(att_mask != 0.0, Att, -1e9)
    Att = jax.nn.softmax(Att, axis=1)
    x_out = (Att @ V) * x_mask
    return x_out, e_out


def init_params(key, d, d_head):
    names = ["q", "k", "v", "e", "ni", "nj"]
    keys = jax.random.split(key, 2 * len(names))
    params = {}
    for i, n in enumerate(names):
        params[f"w{n}"] = (0.1 * jax.random.normal(
            keys[2 * i], (d, d_head))).astype(jnp.float32)
        params[f"b{n}"] = (0.1 * jax.random.normal(
            keys[2 * i + 1], (1, d_head))).astype(jnp.float32)
    return params


if __name__ == "__main__":
    B, N, D, DH = 2, 32, 32, 16

    key = jax.random.PRNGKey(0)
    kx, ke, km, kp = jax.random.split(key, 4)

    x = jax.random.normal(kx, (B, N, D), dtype=jnp.float32)
    e = jax.random.normal(ke, (B, N, N, D), dtype=jnp.float32)
    node_mask = (jax.random.uniform(km, (B, N)) > 0.25).astype(jnp.float32)
    params = init_params(kp, D, DH)

    # tj=16 -> 2 column tiles per batch element: exercises the tiled j loop,
    # the j==0 init, the resident x_out accumulation and the last-tile finalize.
    x_out, e_out = jax.block_until_ready(
        head_attention_pallas(x, e, node_mask, params, tj=16))

    x_ref, e_ref = head_attention_ref(x, e, node_mask, params)
    # e is cast to bf16 for the MXU and e_out is stored in bf16, so tolerances
    # account for bf16 rounding.
    assert jnp.allclose(x_out, x_ref, atol=2e-2, rtol=2e-2)
    assert jnp.allclose(e_out.astype(jnp.float32), e_ref, atol=3e-2, rtol=3e-2)

    print("KERNEL_OK")
</pallas_src>

<mosaic_0001>
module attributes {stable_mosaic.version = 11 : i64} {
  func.func @head_attention_kernel(%arg0: i32, %arg1: i32, %arg2: memref<1x32x512xf32, #tpu.memory_space<vmem>>, %arg3: memref<1x32x256xf32, #tpu.memory_space<vmem>>, %arg4: memref<1x32x256xf32, #tpu.memory_space<vmem>>, %arg5: memref<1x2x256xf32, #tpu.memory_space<vmem>>, %arg6: memref<1x2x256xf32, #tpu.memory_space<vmem>>, %arg7: memref<1x32x16xf32, #tpu.memory_space<vmem>>, %arg8: memref<1x32x1xf32, #tpu.memory_space<vmem>>, %arg9: memref<1x1x1x16xf32, #tpu.memory_space<vmem>>, %arg10: memref<1x1x1x256xf32, #tpu.memory_space<vmem>>, %arg11: memref<512x256xbf16, #tpu.memory_space<vmem>>, %arg12: memref<1x256xf32, #tpu.memory_space<vmem>>, %arg13: memref<256x16xf32, #tpu.memory_space<vmem>>, %arg14: memref<1x32x16xf32, #tpu.memory_space<vmem>>, %arg15: memref<1x32x256xbf16, #tpu.memory_space<vmem>>) attributes {dimension_semantics = [#tpu.dimension_semantics<parallel>, #tpu.dimension_semantics<arbitrary>], iteration_bounds = array<i64: 2, 2>, scalar_prefetch = 0 : i64, scratch_operands = 0 : i64, tpu.core_type = #tpu.core_type<tc>, window_params = [{transform_indices = @transform_0, window_bounds = array<i64: 1, 32, 512>}, {transform_indices = @transform_1, window_bounds = array<i64: 1, 32, 256>}, {transform_indices = @transform_2, window_bounds = array<i64: 1, 32, 256>}, {transform_indices = @transform_3, window_bounds = array<i64: 1, 2, 256>}, {transform_indices = @transform_4, window_bounds = array<i64: 1, 2, 256>}, {transform_indices = @transform_5, window_bounds = array<i64: 1, 32, 16>}, {transform_indices = @transform_6, window_bounds = array<i64: 1, 32, 1>}, {transform_indices = @transform_7, window_bounds = array<i64: 1, 1, 1, 16>}, {transform_indices = @transform_8, window_bounds = array<i64: 1, 1, 1, 256>}, {pipeline_mode = #tpu.pipeline_mode<synchronous>, transform_indices = @transform_9, window_bounds = array<i64: 512, 256>}, {pipeline_mode = #tpu.pipeline_mode<synchronous>, transform_indices = @transform_10, window_bounds = array<i64: 1, 256>}, {pipeline_mode = #tpu.pipeline_mode<synchronous>, transform_indices = @transform_11, window_bounds = array<i64: 256, 16>}, {transform_indices = @transform_12, window_bounds = array<i64: 1, 32, 16>}, {transform_indices = @transform_13, window_bounds = array<i64: 1, 32, 256>}]} {
    %c0_i32 = arith.constant 0 : i32
    %0 = arith.cmpi eq, %arg1, %c0_i32 : i32
    %1 = arith.extui %0 : i1 to i32
    %c0_i32_0 = arith.constant 0 : i32
    %2 = arith.cmpi ne, %1, %c0_i32_0 : i32
    scf.if %2 {
      %cst_48 = arith.constant 0.000000e+00 : f32
      %75 = vector.broadcast %cst_48 : f32 to vector<32x16xf32>
      %c0_49 = arith.constant 0 : index
      %c0_50 = arith.constant 0 : index
      %c0_51 = arith.constant 0 : index
      %76 = vector.load %arg14[%c0_49, %c0_50, %c0_51] : memref<1x32x16xf32, #tpu.memory_space<vmem>>, vector<1x32x16xf32>
      %77 = vector.shape_cast %76 : vector<1x32x16xf32> to vector<32x16xf32>
      %78 = vector.shape_cast %75 : vector<32x16xf32> to vector<1x32x16xf32>
      tpu.vector_store %arg14[%c0_49, %c0_50, %c0_51], %78 {strides = array<i32>} : memref<1x32x16xf32, #tpu.memory_space<vmem>>, vector<1x32x16xf32>,
    } else {
    }
    %c0 = arith.constant 0 : index
    %c0_1 = arith.constant 0 : index
    %c0_2 = arith.constant 0 : index
    %3 = vector.load %arg8[%c0, %c0_1, %c0_2] : memref<1x32x1xf32, #tpu.memory_space<vmem>>, vector<1x32x1xf32>
    %4 = vector.shape_cast %3 : vector<1x32x1xf32> to vector<32x1xf32>
    %c0_3 = arith.constant 0 : index
    %c0_4 = arith.constant 0 : index
    %c0_5 = arith.constant 0 : index
    %c0_6 = arith.constant 0 : index
    %5 = vector.load %arg9[%c0_3, %c0_4, %c0_5, %c0_6] : memref<1x1x1x16xf32, #tpu.memory_space<vmem>>, vector<1x1x1x16xf32>
    %6 = vector.shape_cast %5 : vector<1x1x1x16xf32> to vector<1x16xf32>
    %c0_7 = arith.constant 0 : index
    %c0_8 = arith.constant 0 : index
    %c0_9 = arith.constant 0 : index
    %c0_10 = arith.constant 0 : index
    %7 = vector.load %arg10[%c0_7, %c0_8, %c0_9, %c0_10] : memref<1x1x1x256xf32, #tpu.memory_space<vmem>>, vector<1x1x1x256xf32>
    %8 = vector.shape_cast %7 : vector<1x1x1x256xf32> to vector<1x256xf32>
    %c0_11 = arith.constant 0 : index
    %c0_12 = arith.constant 0 : index
    %c0_13 = arith.constant 0 : index
    %9 = vector.load %arg2[%c0_11, %c0_12, %c0_13] : memref<1x32x512xf32, #tpu.memory_space<vmem>>, vector<1x32x512xf32>
    %10 = vector.shape_cast %9 : vector<1x32x512xf32> to vector<32x512xf32>
    %11 = arith.truncf %10 : vector<32x512xf32> to vector<32x512xbf16>
    %c0_14 = arith.constant 0 : index
    %c0_15 = arith.constant 0 : index
    %12 = vector.load %arg11[%c0_14, %c0_15] : memref<512x256xbf16, #tpu.memory_space<vmem>>, vector<512x256xbf16>
    %cst = arith.constant dense<0.000000e+00> : vector<32x256xf32>
    %13 = tpu.matmul %11, %12, %cst {dimension_numbers = #tpu.dot_dimension_numbers<[1], [0], [0], [1], [0, 0, 1, 1], [], []>} : vector<32x512xbf16>, vector<512x256xbf16>, vector<32x256xf32> -> vector<32x256xf32>
    %c0_16 = arith.constant 0 : index
    %c0_17 = arith.constant 0 : index
    %14 = vector.load %arg12[%c0_16, %c0_17] : memref<1x256xf32, #tpu.memory_space<vmem>>, vector<1x256xf32>
    %15 = vector.broadcast %14 : vector<1x256xf32> to vector<32x256xf32>
    %16 = arith.addf %13, %15 : vector<32x256xf32>
    %c0_18 = arith.constant 0 : index
    %17 = arith.index_cast %arg1 : i32 to index
    %c0_19 = arith.constant 0 : index
    %18 = vector.load %arg5[%c0_18, %17, %c0_19] : memref<1x2x256xf32, #tpu.memory_space<vmem>>, vector<1x1x256xf32>
    %19 = vector.shape_cast %18 : vector<1x1x256xf32> to vector<1x256xf32>
    %c0_20 = arith.constant 0 : index
    %20 = arith.index_cast %arg1 : i32 to index
    %c0_21 = arith.constant 0 : index
    %21 = vector.load %arg6[%c0_20, %20, %c0_21] : memref<1x2x256xf32, #tpu.memory_space<vmem>>, vector<1x1x256xf32>
    %22 = vector.shape_cast %21 : vector<1x1x256xf32> to vector<1x256xf32>
    %c0_22 = arith.constant 0 : index
    %c0_23 = arith.constant 0 : index
    %c0_24 = arith.constant 0 : index
    %23 = vector.load %arg4[%c0_22, %c0_23, %c0_24] : memref<1x32x256xf32, #tpu.memory_space<vmem>>, vector<1x32x256xf32>
    %24 = vector.shape_cast %23 : vector<1x32x256xf32> to vector<32x256xf32>
    %25 = vector.broadcast %22 : vector<1x256xf32> to vector<32x256xf32>
    %26 = arith.addf %24, %25 : vector<32x256xf32>
    %27 = arith.addf %26, %16 : vector<32x256xf32>
    %c0_25 = arith.constant 0 : index
    %c0_26 = arith.constant 0 : index
    %c0_27 = arith.constant 0 : index
    %28 = vector.load %arg3[%c0_25, %c0_26, %c0_27] : memref<1x32x256xf32, #tpu.memory_space<vmem>>, vector<1x32x256xf32>
    %29 = vector.shape_cast %28 : vector<1x32x256xf32> to vector<32x256xf32>
    %30 = vector.broadcast %19 : vector<1x256xf32> to vector<32x256xf32>
    %31 = arith.mulf %29, %30 : vector<32x256xf32>
    %32 = arith.mulf %31, %27 : vector<32x256xf32>
    %c0_28 = arith.constant 0 : index
    %c0_29 = arith.constant 0 : index
    %33 = vector.load %arg13[%c0_28, %c0_29] : memref<256x16xf32, #tpu.memory_space<vmem>>, vector<256x16xf32>
    %cst_30 = arith.constant dense<0.000000e+00> : vector<32x16xf32>
    %34 = tpu.matmul %32, %33, %cst_30 {dimension_numbers = #tpu.dot_dimension_numbers<[1], [0], [0], [1], [0, 0, 1, 1], [], []>} : vector<32x256xf32>, vector<256x16xf32>, vector<32x16xf32> -> vector<32x16xf32>
    %35 = vector.broadcast %4 : vector<32x1xf32> to vector<32x16xf32>
    %36 = vector.broadcast %6 : vector<1x16xf32> to vector<32x16xf32>
    %37 = arith.mulf %35, %36 : vector<32x16xf32>
    %cst_31 = arith.constant 0.000000e+00 : f32
    %38 = vector.broadcast %cst_31 : f32 to vector<32x16xf32>
    %39 = arith.cmpf one, %37, %38 : vector<32x16xf32>
    %cst_32 = arith.constant -1.000000e+09 : f32
    %40 = vector.broadcast %cst_32 : f32 to vector<32x16xf32>
    %41 = arith.select %39, %34, %40 : vector<32x16xi1>, vector<32x16xf32>
    %cst_33 = arith.constant dense<0xFF800000> : vector<16xf32>
    %42 = vector.multi_reduction <maximumf>, %41, %cst_33 [0] : vector<32x16xf32> to vector<16xf32>
    %43 = vector.shape_cast %42 : vector<16xf32> to vector<1x16xf32>
    %44 = vector.broadcast %43 : vector<1x16xf32> to vector<32x16xf32>
    %45 = arith.subf %41, %44 : vector<32x16xf32>
    %46 = math.exp %45 : vector<32x16xf32>
    %cst_34 = arith.constant dense<0.000000e+00> : vector<16xf32>
    %47 = vector.multi_reduction <add>, %46, %cst_34 [0] : vector<32x16xf32> to vector<16xf32>
    %48 = vector.shape_cast %47 : vector<16xf32> to vector<1x16xf32>
    %49 = tpu.reciprocal %48 {approx = true} : vector<1x16xf32> -> vector<1x16xf32>
    %50 = vector.broadcast %49 : vector<1x16xf32> to vector<32x16xf32>
    %51 = arith.mulf %46, %50 : vector<32x16xf32>
    %c16_i32 = arith.constant 16 : i32
    %52 = arith.muli %arg1, %c16_i32 : i32
    %53 = tpu.assume_multiple %52, 16 : i32
    %c0_35 = arith.constant 0 : index
    %54 = arith.index_cast %53 : i32 to index
    %c0_36 = arith.constant 0 : index
    %55 = vector.load %arg7[%c0_35, %54, %c0_36] : memref<1x32x16xf32, #tpu.memory_space<vmem>>, vector<1x16x16xf32>
    %56 = vector.shape_cast %55 : vector<1x16x16xf32> to vector<16x16xf32>
    %c0_37 = arith.constant 0 : index
    %c0_38 = arith.constant 0 : index
    %c0_39 = arith.constant 0 : index
    %57 = vector.load %arg14[%c0_37, %c0_38, %c0_39] : memref<1x32x16xf32, #tpu.memory_space<vmem>>, vector<1x32x16xf32>
    %58 = vector.shape_cast %57 : vector<1x32x16xf32> to vector<32x16xf32>
    %cst_40 = arith.constant dense<0.000000e+00> : vector<32x16xf32>
    %59 = tpu.matmul %51, %56, %cst_40 {dimension_numbers = #tpu.dot_dimension_numbers<[1], [0], [0], [1], [0, 0, 1, 1], [], []>} : vector<32x16xf32>, vector<16x16xf32>, vector<32x16xf32> -> vector<32x16xf32>
    %60 = arith.addf %58, %59 : vector<32x16xf32>
    %c0_41 = arith.constant 0 : index
    %c0_42 = arith.constant 0 : index
    %c0_43 = arith.constant 0 : index
    %61 = vector.load %arg14[%c0_41, %c0_42, %c0_43] : memref<1x32x16xf32, #tpu.memory_space<vmem>>, vector<1x32x16xf32>
    %62 = vector.shape_cast %61 : vector<1x32x16xf32> to vector<32x16xf32>
    %63 = vector.shape_cast %60 : vector<32x16xf32> to vector<1x32x16xf32>
    tpu.vector_store %arg14[%c0_41, %c0_42, %c0_43], %63 {strides = array<i32>} : memref<1x32x16xf32, #tpu.memory_space<vmem>>, vector<1x32x16xf32>,
    %64 = vector.broadcast %4 : vector<32x1xf32> to vector<32x256xf32>
    %65 = vector.broadcast %8 : vector<1x256xf32> to vector<32x256xf32>
    %66 = arith.mulf %64, %65 : vector<32x256xf32>
    %67 = arith.mulf %27, %66 : vector<32x256xf32>
    %68 = arith.truncf %67 : vector<32x256xf32> to vector<32x256xbf16>
    %c0_44 = arith.constant 0 : index
    %c0_45 = arith.constant 0 : index
    %c0_46 = arith.constant 0 : index
    %69 = vector.load %arg15[%c0_44, %c0_45, %c0_46] : memref<1x32x256xbf16, #tpu.memory_space<vmem>>, vector<1x32x256xbf16>
    %70 = vector.shape_cast %69 : vector<1x32x256xbf16> to vector<32x256xbf16>
    %71 = vector.shape_cast %68 : vector<32x256xbf16> to vector<1x32x256xbf16>
    tpu.vector_store %arg15[%c0_44, %c0_45, %c0_46], %71 {strides = array<i32>} : memref<1x32x256xbf16, #tpu.memory_space<vmem>>, vector<1x32x256xbf16>,
    %c1_i32 = arith.constant 1 : i32
    %72 = arith.cmpi eq, %arg1, %c1_i32 : i32
    %73 = arith.extui %72 : i1 to i32
    %c0_i32_47 = arith.constant 0 : i32
    %74 = arith.cmpi ne, %73, %c0_i32_47 : i32
    scf.if %74 {
      %c0_48 = arith.constant 0 : index
      %c0_49 = arith.constant 0 : index
      %c0_50 = arith.constant 0 : index
      %75 = vector.load %arg14[%c0_48, %c0_49, %c0_50] : memref<1x32x16xf32, #tpu.memory_space<vmem>>, vector<1x32x16xf32>
      %76 = vector.shape_cast %75 : vector<1x32x16xf32> to vector<32x16xf32>
      %77 = vector.broadcast %4 : vector<32x1xf32> to vector<32x16xf32>
      %78 = arith.mulf %76, %77 : vector<32x16xf32>
      %c0_51 = arith.constant 0 : index
      %c0_52 = arith.constant 0 : index
      %c0_53 = arith.constant 0 : index
      %79 = vector.load %arg14[%c0_51, %c0_52, %c0_53] : memref<1x32x16xf32, #tpu.memory_space<vmem>>, vector<1x32x16xf32>
      %80 = vector.shape_cast %79 : vector<1x32x16xf32> to vector<32x16xf32>
      %81 = vector.shape_cast %78 : vector<32x16xf32> to vector<1x32x16xf32>
      tpu.vector_store %arg14[%c0_51, %c0_52, %c0_53], %81 {strides = array<i32>} : memref<1x32x16xf32, #tpu.memory_space<vmem>>, vector<1x32x16xf32>,
    } else {
    }
    return
  }
  func.func @transform_0(%arg0: i32, %arg1: i32) -> (i32, i32, i32) {
    %c0_i32 = arith.constant 0 : i32
    %c0_i32_0 = arith.constant 0 : i32
    return %arg0, %c0_i32, %arg1 : i32, i32, i32
  }
  func.func @transform_1(%arg0: i32, %arg1: i32) -> (i32, i32, i32) {
    %c0_i32 = arith.constant 0 : i32
    %c0_i32_0 = arith.constant 0 : i32
    %c0_i32_1 = arith.constant 0 : i32
    return %arg0, %c0_i32, %c0_i32_0 : i32, i32, i32
  }
  func.func @transform_2(%arg0: i32, %arg1: i32) -> (i32, i32, i32) {
    %c0_i32 = arith.constant 0 : i32
    %c0_i32_0 = arith.constant 0 : i32
    %c0_i32_1 = arith.constant 0 : i32
    return %arg0, %c0_i32, %c0_i32_0 : i32, i32, i32
  }
  func.func @transform_3(%arg0: i32, %arg1: i32) -> (i32, i32, i32) {
    %c0_i32 = arith.constant 0 : i32
    %c0_i32_0 = arith.constant 0 : i32
    %c0_i32_1 = arith.constant 0 : i32
    return %arg0, %c0_i32, %c0_i32_0 : i32, i32, i32
  }
  func.func @transform_4(%arg0: i32, %arg1: i32) -> (i32, i32, i32) {
    %c0_i32 = arith.constant 0 : i32
    %c0_i32_0 = arith.constant 0 : i32
    %c0_i32_1 = arith.constant 0 : i32
    return %arg0, %c0_i32, %c0_i32_0 : i32, i32, i32
  }
  func.func @transform_5(%arg0: i32, %arg1: i32) -> (i32, i32, i32) {
    %c0_i32 = arith.constant 0 : i32
    %c0_i32_0 = arith.constant 0 : i32
    %c0_i32_1 = arith.constant 0 : i32
    return %arg0, %c0_i32, %c0_i32_0 : i32, i32, i32
  }
  func.func @transform_6(%arg0: i32, %arg1: i32) -> (i32, i32, i32) {
    %c0_i32 = arith.constant 0 : i32
    %c0_i32_0 = arith.constant 0 : i32
    %c0_i32_1 = arith.constant 0 : i32
    return %arg0, %c0_i32, %c0_i32_0 : i32, i32, i32
  }
  func.func @transform_7(%arg0: i32, %arg1: i32) -> (i32, i32, i32, i32) {
    %c0_i32 = arith.constant 0 : i32
    %c0_i32_0 = arith.constant 0 : i32
    %c0_i32_1 = arith.constant 0 : i32
    return %arg0, %arg1, %c0_i32, %c0_i32_0 : i32, i32, i32, i32
  }
  func.func @transform_8(%arg0: i32, %arg1: i32) -> (i32, i32, i32, i32) {
    %c0_i32 = arith.constant 0 : i32
    %c0_i32_0 = arith.constant 0 : i32
    %c0_i32_1 = arith.constant 0 : i32
    return %arg0, %arg1, %c0_i32, %c0_i32_0 : i32, i32, i32, i32
  }
  func.func @transform_9(%arg0: i32, %arg1: i32) -> (i32, i32) {
    %c0_i32 = arith.constant 0 : i32
    %c0_i32_0 = arith.constant 0 : i32
    %c0_i32_1 = arith.constant 0 : i32
    return %c0_i32, %c0_i32_0 : i32, i32
  }
  func.func @transform_10(%arg0: i32, %arg1: i32) -> (i32, i32) {
    %c0_i32 = arith.constant 0 : i32
    %c0_i32_0 = arith.constant 0 : i32
    %c0_i32_1 = arith.constant 0 : i32
    return %c0_i32, %c0_i32_0 : i32, i32
  }
  func.func @transform_11(%arg0: i32, %arg1: i32) -> (i32, i32) {
    %c0_i32 = arith.constant 0 : i32
    %c0_i32_0 = arith.constant 0 : i32
    %c0_i32_1 = arith.constant 0 : i32
    return %c0_i32, %c0_i32_0 : i32, i32
  }
  func.func @transform_12(%arg0: i32, %arg1: i32) -> (i32, i32, i32) {
    %c0_i32 = arith.constant 0 : i32
    %c0_i32_0 = arith.constant 0 : i32
    %c0_i32_1 = arith.constant 0 : i32
    return %arg0, %c0_i32, %c0_i32_0 : i32, i32, i32
  }
  func.func @transform_13(%arg0: i32, %arg1: i32) -> (i32, i32, i32) {
    %c0_i32 = arith.constant 0 : i32
    %c0_i32_0 = arith.constant 0 : i32
    return %arg0, %c0_i32, %arg1 : i32, i32, i32
  }
}

</mosaic_0001>

<llo_original>
// kernel: tpu_custom_call.1
$region0: #{tpu_custom_call.1}
  #allocation0 [shape = 'u32[]', space=smem, size = 0x4, offset = 0x4, fixed_abs, tag = 'smem constant byte address 0x4 - core index']
  #allocation1 [shape = 'u32[144,128]{1,0:T(1,128)}', space=vmem, size = 0x12000, scoped, tag = 'internal scratch']
  %s0 = inlined_call_operand.hbm [shape: f32[2,32,1024], index: 0, kind: input, shape index: {}]
  %s1 = inlined_call_operand.vmem [shape: f32[2,32,256], index: 1, kind: input, shape index: {}]
  %s2 = inlined_call_operand.vmem [shape: f32[2,32,256], index: 2, kind: input, shape index: {}]
  %s3 = inlined_call_operand.vmem [shape: f32[2,2,256], index: 3, kind: input, shape index: {}]
  %s4 = inlined_call_operand.vmem [shape: f32[2,2,256], index: 4, kind: input, shape index: {}]
  %s5 = inlined_call_operand.vmem [shape: f32[2,32,16], index: 5, kind: input, shape index: {}]
  %s6 = inlined_call_operand.vmem [shape: f32[2,32,1], index: 6, kind: input, shape index: {}]
  %s7 = inlined_call_operand.vmem [shape: f32[2,2,1,16], index: 7, kind: input, shape index: {}]
  %s8 = inlined_call_operand.vmem [shape: f32[2,2,1,256], index: 8, kind: input, shape index: {}]
  %s9 = inlined_call_operand.hbm [shape: bf16[512,256], index: 9, kind: input, shape index: {}]
  %s10 = inlined_call_operand.vmem [shape: f32[1,256], index: 10, kind: input, shape index: {}]
  %s11 = inlined_call_operand.vmem [shape: f32[256,16], index: 11, kind: input, shape index: {}]
  %s12 = inlined_call_operand.vmem [shape: f32[2,32,16], index: 12, kind: output, shape index: {0}]
  %s13 = inlined_call_operand.hbm [shape: bf16[2,32,512], index: 13, kind: output, shape index: {1}]
  %14 = xla_tuple %s12, %s13
  %s15 = sld [smem:[#allocation0]]
  $region105: #{tpu_custom_call.1} parent=0
    _
  %s17 = ssub.s32 1, %s15
  %s18 = scalar_select 0, %s17, %s15
  $region1: #{tpu_custom_call.1} parent=0
    #allocation2 [shape = 'u8[131072]{0}', space=vmem, size = 0x20000, scoped, tag = 'input window, operand 0']
    #allocation3 [shape = 's32[2]{0}', space=sflag, size = 0x8, scoped, tag = 'scoped memory for tpu_custom_call.1']
    #allocation4 [shape = 's32[2]{0}', space=sflag, size = 0x8, scoped, tag = 'scoped memory for tpu_custom_call.1']
    #allocation5 [shape = 'u8[262144]{0}', space=vmem, size = 0x40000, scoped, tag = 'input window, operand 9, single buffered']
    #allocation6 [shape = 's32[1]{0}', space=sflag, size = 0x4, scoped, tag = 'scoped memory for tpu_custom_call.1']
    #allocation7 [shape = 'u8[32768]{0}', space=vmem, size = 0x8000, scoped, tag = 'output window, operand 1']
    %19 = vsyncpa [#allocation3], 0
    %s20 = scalar_lea.sflag [#allocation3], 1
    %21 = vsyncpa %s20, 0
    %22 = vsyncpa [#allocation6], 0
    %23 = vsyncpa [#allocation4], 0
    %s24 = scalar_lea.sflag [#allocation4], 1
    %25 = vsyncpa %s24, 0
    loop: start=0, step=1, limit=6
    $region2: #{tpu_custom_call.1} parent=1 // loop_pre_header
      _
    $region3: #{tpu_custom_call.1} parent=1 // loop_header
      %s27 = sphi 0, %s31
      %p28 = scmp.ge.s32.totalorder %s27, 6
      %s34 = sphi 0, %s46
      %s35 = sphi 0, %s42
      %s36 = sphi 0, %s34
      %s37 = sphi 0, %s35
      %s38 = sphi 0, %s36
      %s39 = sphi 0, %s37
      %s51 = sphi 0, %s53
      %s54 = sphi 0, %s51
      %s55 = sphi 0, %s54
      %s71 = sphi 0, %s55
      %s77 = sphi 0, %s79
      %s80 = sphi 0, %s77
      %s81 = sphi 0, %s80
      %s97 = sphi 0, %s81
      %s103 = sphi 0, %s105
      %s106 = sphi 0, %s103
      %s107 = sphi 0, %s106
      %s123 = sphi 0, %s107
      %s129 = sphi 0, %s131
      %s132 = sphi 0, %s129
      %s133 = sphi 0, %s132
      %s149 = sphi 0, %s133
      %s155 = sphi 0, %s157
      %s158 = sphi 0, %s155
      %s159 = sphi 0, %s158
      %s175 = sphi 0, %s159
      %s181 = sphi 0, %s183
      %s184 = sphi 0, %s181
      %s185 = sphi 0, %s184
      %s201 = sphi 0, %s185
      %s207 = sphi 0, %s209
      %s210 = sphi 0, %s207
      %s211 = sphi 0, %s210
      %s227 = sphi 0, %s211
      %s235 = sphi 0, %s237
      %s238 = sphi 0, %s235
      %s239 = sphi 0, %s238
      %s255 = sphi 0, %s239
      %s263 = sphi 0, %s265
      %s266 = sphi 0, %s263
      %s267 = sphi 0, %s266
      %s283 = sphi 0, %s267
      %s287 = sphi 0, %s287
      %s289 = sphi 0, %s287
      %s290 = sphi 0, %s289
      %s304 = sphi 0, %s290
      %s308 = sphi 0, %s308
      %s310 = sphi 0, %s308
      %s311 = sphi 0, %s310
      %s325 = sphi 0, %s311
      %s329 = sphi 0, %s329
      %s331 = sphi 0, %s329
      %s332 = sphi 0, %s331
      %s346 = sphi 0, %s332
      %s352 = sphi 0, %s354
      %s355 = sphi 0, %s352
      %s356 = sphi 0, %s355
      %s372 = sphi 0, %s356
      %s380 = sphi 0, %s382
      %s383 = sphi 0, %s380
      %s384 = sphi 0, %s383
      %s400 = sphi 0, %s384
    $region4: #{tpu_custom_call.1} parent=1 // loop_header_branch
      %30 = sbr.rel (%p28) target = $region8
    $region5: #{tpu_custom_call.1} parent=1 // loop_body
      %s32 = ssub.s32 %s27, 1
      %s33 = ssub.s32 %s27, 2
      %s40 = sadd.s32 1, %s35
      %p41 = scmp.ge.s32.totalorder %s40, 2
      %s42 = scalar_select %p41, 0, %s40
      %s43 = sadd.s32 1, %s34
      %s44 = scalar_select %p41, %s43, %s34
      %p45 = scmp.ge.s32.totalorder %s44, 2
      %s46 = scalar_select %p45, 0, %s44
      %s47 = ssub.s32 %s34, %s46
      %s48 = ssub.s32 %s35, %s42
      %s49 = sor.u32 %s47, %s48
      %p50 = scmp.eq.s32.totalorder %s49, 0
      %s52 = sadd.s32 %s51, 1
      %s53 = scalar_select %p50, %s51, %s52
      %p56 = pneg %p50
      %p57 = scmp.eq.s32.totalorder %s27, 3
      %p58 = por %p56, %p57
      %p59 = scmp.ne.s32.totalorder %s51, %s54
      %p60 = scmp.eq.s32.totalorder %s27, 0
      %p61 = por %p59, %p60
      %p62 = scmp.ne.s32.totalorder %s51, %s54
      %p63 = scmp.eq.s32.totalorder %s32, 3
      %p64 = por %p62, %p63
      %p65 = scmp.ne.s32.totalorder %s54, %s55
      %p66 = scmp.eq.s32.totalorder %s32, 0
      %p67 = por %p65, %p66
      %p68 = scmp.ne.s32.totalorder %s54, %s55
      %p69 = scmp.eq.s32.totalorder %s33, 3
      %p70 = por %p68, %p69
      %p72 = scmp.ne.s32.totalorder %s55, %s71
      %p73 = scmp.eq.s32.totalorder %s33, 0
      %p74 = por %p72, %p73
      %s75 = ssub.s32 %s34, %s46
      %p76 = scmp.eq.s32.totalorder %s75, 0
      %s78 = sadd.s32 %s77, 1
      %s79 = scalar_select %p76, %s77, %s78
      %p82 = pneg %p76
      %p83 = scmp.eq.s32.totalorder %s27, 3
      %p84 = por %p82, %p83
      %p85 = scmp.ne.s32.totalorder %s77, %s80
      %p86 = scmp.eq.s32.totalorder %s27, 0
      %p87 = por %p85, %p86
      %p88 = scmp.ne.s32.totalorder %s77, %s80
      %p89 = scmp.eq.s32.totalorder %s32, 3
      %p90 = por %p88, %p89
      %p91 = scmp.ne.s32.totalorder %s80, %s81
      %p92 = scmp.eq.s32.totalorder %s32, 0
      %p93 = por %p91, %p92
      %p94 = scmp.ne.s32.totalorder %s80, %s81
      %p95 = scmp.eq.s32.totalorder %s33, 3
      %p96 = por %p94, %p95
      %p98 = scmp.ne.s32.totalorder %s81, %s97
      %p99 = scmp.eq.s32.totalorder %s33, 0
      %p100 = por %p98, %p99
      %s101 = ssub.s32 %s34, %s46
      %p102 = scmp.eq.s32.totalorder %s101, 0
      %s104 = sadd.s32 %s103, 1
      %s105 = scalar_select %p102, %s103, %s104
      %p108 = pneg %p102
      %p109 = scmp.eq.s32.totalorder %s27, 3
      %p110 = por %p108, %p109
      %p111 = scmp.ne.s32.totalorder %s103, %s106
      %p112 = scmp.eq.s32.totalorder %s27, 0
      %p113 = por %p111, %p112
      %p114 = scmp.ne.s32.totalorder %s103, %s106
      %p115 = scmp.eq.s32.totalorder %s32, 3
      %p116 = por %p114, %p115
      %p117 = scmp.ne.s32.totalorder %s106, %s107
      %p118 = scmp.eq.s32.totalorder %s32, 0
      %p119 = por %p117, %p118
      %p120 = scmp.ne.s32.totalorder %s106, %s107
      %p121 = scmp.eq.s32.totalorder %s33, 3
      %p122 = por %p120, %p121
      %p124 = scmp.ne.s32.totalorder %s107, %s123
      %p125 = scmp.eq.s32.totalorder %s33, 0
      %p126 = por %p124, %p125
      %s127 = ssub.s32 %s34, %s46
      %p128 = scmp.eq.s32.totalorder %s127, 0
      %s130 = sadd.s32 %s129, 1
      %s131 = scalar_select %p128, %s129, %s130
      %p134 = pneg %p128
      %p135 = scmp.eq.s32.totalorder %s27, 3
      %p136 = por %p134, %p135
      %p137 = scmp.ne.s32.totalorder %s129, %s132
      %p138 = scmp.eq.s32.totalorder %s27, 0
      %p139 = por %p137, %p138
      %p140 = scmp.ne.s32.totalorder %s129, %s132
      %p141 = scmp.eq.s32.totalorder %s32, 3
      %p142 = por %p140, %p141
      %p143 = scmp.ne.s32.totalorder %s132, %s133
      %p144 = scmp.eq.s32.totalorder %s32, 0
      %p145 = por %p143, %p144
      %p146 = scmp.ne.s32.totalorder %s132, %s133
      %p147 = scmp.eq.s32.totalorder %s33, 3
      %p148 = por %p146, %p147
      %p150 = scmp.ne.s32.totalorder %s133, %s149
      %p151 = scmp.eq.s32.totalorder %s33, 0
      %p152 = por %p150, %p151
      %s153 = ssub.s32 %s34, %s46
      %p154 = scmp.eq.s32.totalorder %s153, 0
      %s156 = sadd.s32 %s155, 1
      %s157 = scalar_select %p154, %s155, %s156
      %p160 = pneg %p154
      %p161 = scmp.eq.s32.totalorder %s27, 3
      %p162 = por %p160, %p161
      %p163 = scmp.ne.s32.totalorder %s155, %s158
      %p164 = scmp.eq.s32.totalorder %s27, 0
      %p165 = por %p163, %p164
      %p166 = scmp.ne.s32.totalorder %s155, %s158
      %p167 = scmp.eq.s32.totalorder %s32, 3
      %p168 = por %p166, %p167
      %p169 = scmp.ne.s32.totalorder %s158, %s159
      %p170 = scmp.eq.s32.totalorder %s32, 0
      %p171 = por %p169, %p170
      %p172 = scmp.ne.s32.totalorder %s158, %s159
      %p173 = scmp.eq.s32.totalorder %s33, 3
      %p174 = por %p172, %p173
      %p176 = scmp.ne.s32.totalorder %s159, %s175
      %p177 = scmp.eq.s32.totalorder %s33, 0
      %p178 = por %p176, %p177
      %s179 = ssub.s32 %s34, %s46
      %p180 = scmp.eq.s32.totalorder %s179, 0
      %s182 = sadd.s32 %s181, 1
      %s183 = scalar_select %p180, %s181, %s182
      %p186 = pneg %p180
      %p187 = scmp.eq.s32.totalorder %s27, 3
      %p188 = por %p186, %p187
      %p189 = scmp.ne.s32.totalorder %s181, %s184
      %p190 = scmp.eq.s32.totalorder %s27, 0
      %p191 = por %p189, %p190
      %p192 = scmp.ne.s32.totalorder %s181, %s184
      %p193 = scmp.eq.s32.totalorder %s32, 3
      %p194 = por %p192, %p193
      %p195 = scmp.ne.s32.totalorder %s184, %s185
      %p196 = scmp.eq.s32.totalorder %s32, 0
      %p197 = por %p195, %p196
      %p198 = scmp.ne.s32.totalorder %s184, %s185
      %p199 = scmp.eq.s32.totalorder %s33, 3
      %p200 = por %p198, %p199
      %p202 = scmp.ne.s32.totalorder %s185, %s201
      %p203 = scmp.eq.s32.totalorder %s33, 0
      %p204 = por %p202, %p203
      %s205 = ssub.s32 %s34, %s46
      %p206 = scmp.eq.s32.totalorder %s205, 0
      %s208 = sadd.s32 %s207, 1
      %s209 = scalar_select %p206, %s207, %s208
      %p212 = pneg %p206
      %p213 = scmp.eq.s32.totalorder %s27, 3
      %p214 = por %p212, %p213
      %p215 = scmp.ne.s32.totalorder %s207, %s210
      %p216 = scmp.eq.s32.totalorder %s27, 0
      %p217 = por %p215, %p216
      %p218 = scmp.ne.s32.totalorder %s207, %s210
      %p219 = scmp.eq.s32.totalorder %s32, 3
      %p220 = por %p218, %p219
      %p221 = scmp.ne.s32.totalorder %s210, %s211
      %p222 = scmp.eq.s32.totalorder %s32, 0
      %p223 = por %p221, %p222
      %p224 = scmp.ne.s32.totalorder %s210, %s211
      %p225 = scmp.eq.s32.totalorder %s33, 3
      %p226 = por %p224, %p225
      %p228 = scmp.ne.s32.totalorder %s211, %s227
      %p229 = scmp.eq.s32.totalorder %s33, 0
      %p230 = por %p228, %p229
      %s231 = ssub.s32 %s34, %s46
      %s232 = ssub.s32 %s35, %s42
      %s233 = sor.u32 %s231, %s232
      %p234 = scmp.eq.s32.totalorder %s233, 0
      %s236 = sadd.s32 %s235, 1
      %s237 = scalar_select %p234, %s235, %s236
      %p240 = pneg %p234
      %p241 = scmp.eq.s32.totalorder %s27, 3
      %p242 = por %p240, %p241
      %p243 = scmp.ne.s32.totalorder %s235, %s238
      %p244 = scmp.eq.s32.totalorder %s27, 0
      %p245 = por %p243, %p244
      %p246 = scmp.ne.s32.totalorder %s235, %s238
      %p247 = scmp.eq.s32.totalorder %s32, 3
      %p248 = por %p246, %p247
      %p249 = scmp.ne.s32.totalorder %s238, %s239
      %p250 = scmp.eq.s32.totalorder %s32, 0
      %p251 = por %p249, %p250
      %p252 = scmp.ne.s32.totalorder %s238, %s239
      %p253 = scmp.eq.s32.totalorder %s33, 3
      %p254 = por %p252, %p253
      %p256 = scmp.ne.s32.totalorder %s239, %s255
      %p257 = scmp.eq.s32.totalorder %s33, 0
      %p258 = por %p256, %p257
      %s259 = ssub.s32 %s34, %s46
      %s260 = ssub.s32 %s35, %s42
      %s261 = sor.u32 %s259, %s260
      %p262 = scmp.eq.s32.totalorder %s261, 0
      %s264 = sadd.s32 %s263, 1
      %s265 = scalar_select %p262, %s263, %s264
      %p268 = pneg %p262
      %p269 = scmp.eq.s32.totalorder %s27, 3
      %p270 = por %p268, %p269
      %p271 = scmp.ne.s32.totalorder %s263, %s266
      %p272 = scmp.eq.s32.totalorder %s27, 0
      %p273 = por %p271, %p272
      %p274 = scmp.ne.s32.totalorder %s263, %s266
      %p275 = scmp.eq.s32.totalorder %s32, 3
      %p276 = por %p274, %p275
      %p277 = scmp.ne.s32.totalorder %s266, %s267
      %p278 = scmp.eq.s32.totalorder %s32, 0
      %p279 = por %p277, %p278
      %p280 = scmp.ne.s32.totalorder %s266, %s267
      %p281 = scmp.eq.s32.totalorder %s33, 3
      %p282 = por %p280, %p281
      %p284 = scmp.ne.s32.totalorder %s267, %s283
      %p285 = scmp.eq.s32.totalorder %s33, 0
      %p286 = por %p284, %p285
      %s288 = sadd.s32 %s287, 1
      %p291 = scmp.eq.s32.totalorder %s27, 3
      %p292 = scmp.ne.s32.totalorder %s287, %s289
      %p293 = scmp.eq.s32.totalorder %s27, 0
      %p294 = por %p292, %p293
      %p295 = scmp.ne.s32.totalorder %s287, %s289
      %p296 = scmp.eq.s32.totalorder %s32, 3
      %p297 = por %p295, %p296
      %p298 = scmp.ne.s32.totalorder %s289, %s290
      %p299 = scmp.eq.s32.totalorder %s32, 0
      %p300 = por %p298, %p299
      %p301 = scmp.ne.s32.totalorder %s289, %s290
      %p302 = scmp.eq.s32.totalorder %s33, 3
      %p303 = por %p301, %p302
      %p305 = scmp.ne.s32.totalorder %s290, %s304
      %p306 = scmp.eq.s32.totalorder %s33, 0
      %p307 = por %p305, %p306
      %s309 = sadd.s32 %s308, 1
      %p312 = scmp.eq.s32.totalorder %s27, 3
      %p313 = scmp.ne.s32.totalorder %s308, %s310
      %p314 = scmp.eq.s32.totalorder %s27, 0
      %p315 = por %p313, %p314
      %p316 = scmp.ne.s32.totalorder %s308, %s310
      %p317 = scmp.eq.s32.totalorder %s32, 3
      %p318 = por %p316, %p317
      %p319 = scmp.ne.s32.totalorder %s310, %s311
      %p320 = scmp.eq.s32.totalorder %s32, 0
      %p321 = por %p319, %p320
      %p322 = scmp.ne.s32.totalorder %s310, %s311
      %p323 = scmp.eq.s32.totalorder %s33, 3
      %p324 = por %p322, %p323
      %p326 = scmp.ne.s32.totalorder %s311, %s325
      %p327 = scmp.eq.s32.totalorder %s33, 0
      %p328 = por %p326, %p327
      %s330 = sadd.s32 %s329, 1
      %p333 = scmp.eq.s32.totalorder %s27, 3
      %p334 = scmp.ne.s32.totalorder %s329, %s331
      %p335 = scmp.eq.s32.totalorder %s27, 0
      %p336 = por %p334, %p335
      %p337 = scmp.ne.s32.totalorder %s329, %s331
      %p338 = scmp.eq.s32.totalorder %s32, 3
      %p339 = por %p337, %p338
      %p340 = scmp.ne.s32.totalorder %s331, %s332
      %p341 = scmp.eq.s32.totalorder %s32, 0
      %p342 = por %p340, %p341
      %p343 = scmp.ne.s32.totalorder %s331, %s332
      %p344 = scmp.eq.s32.totalorder %s33, 3
      %p345 = por %p343, %p344
      %p347 = scmp.ne.s32.totalorder %s332, %s346
      %p348 = scmp.eq.s32.totalorder %s33, 0
      %p349 = por %p347, %p348
      %s350 = ssub.s32 %s34, %s46
      %p351 = scmp.eq.s32.totalorder %s350, 0
      %s353 = sadd.s32 %s352, 1
      %s354 = scalar_select %p351, %s352, %s353
      %p357 = pneg %p351
      %p358 = scmp.eq.s32.totalorder %s27, 3
      %p359 = por %p357, %p358
      %p360 = scmp.ne.s32.totalorder %s352, %s355
      %p361 = scmp.eq.s32.totalorder %s27, 0
      %p362 = por %p360, %p361
      %p363 = scmp.ne.s32.totalorder %s352, %s355
      %p364 = scmp.eq.s32.totalorder %s32, 3
      %p365 = por %p363, %p364
      %p366 = scmp.ne.s32.totalorder %s355, %s356
      %p367 = scmp.eq.s32.totalorder %s32, 0
      %p368 = por %p366, %p367
      %p369 = scmp.ne.s32.totalorder %s355, %s356
      %p370 = scmp.eq.s32.totalorder %s33, 3
      %p371 = por %p369, %p370
      %p373 = scmp.ne.s32.totalorder %s356, %s372
      %p374 = scmp.eq.s32.totalorder %s33, 0
      %p375 = por %p373, %p374
      %s376 = ssub.s32 %s34, %s46
      %s377 = ssub.s32 %s35, %s42
      %s378 = sor.u32 %s376, %s377
      %p379 = scmp.eq.s32.totalorder %s378, 0
      %s381 = sadd.s32 %s380, 1
      %s382 = scalar_select %p379, %s380, %s381
      %p385 = pneg %p379
      %p386 = scmp.eq.s32.totalorder %s27, 3
      %p387 = por %p385, %p386
      %p388 = scmp.ne.s32.totalorder %s380, %s383
      %p389 = scmp.eq.s32.totalorder %s27, 0
      %p390 = por %p388, %p389
      %p391 = scmp.ne.s32.totalorder %s380, %s383
      %p392 = scmp.eq.s32.totalorder %s32, 3
      %p393 = por %p391, %p392
      %p394 = scmp.ne.s32.totalorder %s383, %s384
      %p395 = scmp.eq.s32.totalorder %s32, 0
      %p396 = por %p394, %p395
      %p397 = scmp.ne.s32.totalorder %s383, %s384
      %p398 = scmp.eq.s32.totalorder %s33, 3
      %p399 = por %p397, %p398
      %p401 = scmp.ne.s32.totalorder %s384, %s400
      %p402 = scmp.eq.s32.totalorder %s33, 0
      %p403 = por %p401, %p402
      %p404 = scmp.le.s32.totalorder 1, %s27
      %p405 = scmp.lt.s32.totalorder %s27, 5
      %p406 = pnand %p404, %p405
      %p407 = pneg %p406
      // Predicated region
      $region9: #{tpu_custom_call.1} parent=5 // pred_check
        _
      $region10: #{tpu_custom_call.1} parent=5 // pred_check_branch
        %409 = sbr.rel (%p406) target = $region12
      $region11: #{tpu_custom_call.1} parent=5 // pred_region
        %s410 = ssub.s32 %s27, 1
        // Predicated region
        $region13: #{tpu_custom_call.1} parent=11 // pred_check
          %p411 = pneg %p300
        $region14: #{tpu_custom_call.1} parent=11 // pred_check_branch
          %413 = sbr.rel (%p411) target = $region16
        $region15: #{tpu_custom_call.1} parent=11 // pred_region
          %s415 = ssub.s32 8192, 8192
          %416 = vsyncadd [#allocation6], %s415
          %s417 = sshll.u32 [#allocation5], 4
          %s418 = int_to_ptr.vmem [resolvable:$true] %s417
          %423 = dma.hbm_to_vmem [thread:$0]  %s9, 8192, %s418, [#allocation6], 128, 128, 8
        $region16: #{tpu_custom_call.1} parent=11 // pred_fallthru
          _
        // Predicated region
        $region17: #{tpu_custom_call.1} parent=11 // pred_check
          %p424 = pneg %p321
        $region18: #{tpu_custom_call.1} parent=11 // pred_check_branch
          %426 = sbr.rel (%p424) target = $region20
        $region19: #{tpu_custom_call.1} parent=11 // pred_region
          _
        $region20: #{tpu_custom_call.1} parent=11 // pred_fallthru
          _
        // Predicated region
        $region21: #{tpu_custom_call.1} parent=11 // pred_check
          %p427 = pneg %p342
        $region22: #{tpu_custom_call.1} parent=11 // pred_check_branch
          %429 = sbr.rel (%p427) target = $region24
        $region23: #{tpu_custom_call.1} parent=11 // pred_region
          _
        $region24: #{tpu_custom_call.1} parent=11 // pred_fallthru
          _
      $region12: #{tpu_custom_call.1} parent=5 // pred_fallthru
        _
      %p430 = scmp.lt.s32.totalorder %s27, 4
      // Predicated region
      $region25: #{tpu_custom_call.1} parent=5 // pred_check
        %p431 = pneg %p430
      $region26: #{tpu_custom_call.1} parent=5 // pred_check_branch
        %433 = sbr.rel (%p431) target = $region28
      $region27: #{tpu_custom_call.1} parent=5 // pred_region
        // Predicated region
        $region29: #{tpu_custom_call.1} parent=27 // pred_check
          %p434 = pneg %p61
        $region30: #{tpu_custom_call.1} parent=27 // pred_check_branch
          %436 = sbr.rel (%p434) target = $region32
        $region31: #{tpu_custom_call.1} parent=27 // pred_region
          %s437 = sand.u32 %s51, 1
          %s438 = scalar_lea.sflag [#allocation3], %s437
          %s439 = sand.u32 %s51, 1
          %s440 = smul.addr %s439, 128
          %s441 = scalar_lea.vmem [#allocation2], %s440
          %s442 = smul.u32 4, %s35
          %s444 = ssub.s32 2048, 2048
          %445 = vsyncadd %s438, %s444
          %s446 = smul.addr %s34, 32
          %s447 = sadd.s32 %s442, %s446
          %s448 = smul.addr %s447, 128
          %s449 = scalar_lea.hbm %s0, %s448
          %s450 = sshll.u32 %s441, 4
          %s451 = int_to_ptr.vmem [resolvable:$true] %s450
          %456 = dma.hbm_to_vmem [thread:$0]  %s449, 2048, %s451, %s438, 1024, 512, 32
        $region32: #{tpu_custom_call.1} parent=27 // pred_fallthru
          _
        // Predicated region
        $region33: #{tpu_custom_call.1} parent=27 // pred_check
          %p457 = pneg %p87
        $region34: #{tpu_custom_call.1} parent=27 // pred_check_branch
          %459 = sbr.rel (%p457) target = $region36
        $region35: #{tpu_custom_call.1} parent=27 // pred_region
          %p460 = scmp.lt.s32.totalorder %s34, 1
          %s461 = scalar_select %p460, %s34, 1
          %s462 = smul.addr %s461, 8
          %s463 = smul.addr %s462, 8
          %s464 = scalar_lea.vmem %s1, %s463
        $region36: #{tpu_custom_call.1} parent=27 // pred_fallthru
          _
        // Predicated region
        $region37: #{tpu_custom_call.1} parent=27 // pred_check
          %p465 = pneg %p113
        $region38: #{tpu_custom_call.1} parent=27 // pred_check_branch
          %467 = sbr.rel (%p465) target = $region40
        $region39: #{tpu_custom_call.1} parent=27 // pred_region
          %p468 = scmp.lt.s32.totalorder %s34, 1
          %s469 = scalar_select %p468, %s34, 1
          %s470 = smul.addr %s469, 8
          %s471 = smul.addr %s470, 8
          %s472 = scalar_lea.vmem %s2, %s471
        $region40: #{tpu_custom_call.1} parent=27 // pred_fallthru
          _
        // Predicated region
        $region41: #{tpu_custom_call.1} parent=27 // pred_check
          %p473 = pneg %p139
        $region42: #{tpu_custom_call.1} parent=27 // pred_check_branch
          %475 = sbr.rel (%p473) target = $region44
        $region43: #{tpu_custom_call.1} parent=27 // pred_region
          %p476 = scmp.lt.s32.totalorder %s34, 1
          %s477 = scalar_select %p476, %s34, 1
          %s478 = smul.addr %s477, 2
          %s479 = smul.addr %s478, 2
          %s480 = scalar_lea.vmem %s3, %s479
        $region44: #{tpu_custom_call.1} parent=27 // pred_fallthru
          _
        // Predicated region
        $region45: #{tpu_custom_call.1} parent=27 // pred_check
          %p481 = pneg %p165
        $region46: #{tpu_custom_call.1} parent=27 // pred_check_branch
          %483 = sbr.rel (%p481) target = $region48
        $region47: #{tpu_custom_call.1} parent=27 // pred_region
          %p484 = scmp.lt.s32.totalorder %s34, 1
          %s485 = scalar_select %p484, %s34, 1
          %s486 = smul.addr %s485, 2
          %s487 = smul.addr %s486, 2
          %s488 = scalar_lea.vmem %s4, %s487
        $region48: #{tpu_custom_call.1} parent=27 // pred_fallthru
          _
        // Predicated region
        $region49: #{tpu_custom_call.1} parent=27 // pred_check
          %p489 = pneg %p191
        $region50: #{tpu_custom_call.1} parent=27 // pred_check_branch
          %491 = sbr.rel (%p489) target = $region52
        $region51: #{tpu_custom_call.1} parent=27 // pred_region
          %p492 = scmp.lt.s32.totalorder %s34, 1
          %s493 = scalar_select %p492, %s34, 1
          %s494 = smul.addr %s493, 4
          %s495 = smul.addr %s494, 8
          %s496 = scalar_lea.vmem %s5, %s495
        $region52: #{tpu_custom_call.1} parent=27 // pred_fallthru
          _
        // Predicated region
        $region53: #{tpu_custom_call.1} parent=27 // pred_check
          %p497 = pneg %p217
        $region54: #{tpu_custom_call.1} parent=27 // pred_check_branch
          %499 = sbr.rel (%p497) target = $region56
        $region55: #{tpu_custom_call.1} parent=27 // pred_region
          %p500 = scmp.lt.s32.totalorder %s34, 1
          %s501 = scalar_select %p500, %s34, 1
          %s502 = smul.addr %s501, 4
          %s503 = smul.addr %s502, 8
          %s504 = scalar_lea.vmem %s6, %s503
        $region56: #{tpu_custom_call.1} parent=27 // pred_fallthru
          _
        // Predicated region
        $region57: #{tpu_custom_call.1} parent=27 // pred_check
          %p505 = pneg %p245
        $region58: #{tpu_custom_call.1} parent=27 // pred_check_branch
          %507 = sbr.rel (%p505) target = $region60
        $region59: #{tpu_custom_call.1} parent=27 // pred_region
          %p508 = scmp.lt.s32.totalorder %s34, 1
          %s509 = scalar_select %p508, %s34, 1
          %p510 = scmp.lt.s32.totalorder %s35, 1
          %s511 = scalar_select %p510, %s35, 1
          %s512 = smul.addr %s509, 2
          %s513 = sadd.s32 %s511, %s512
          %s514 = scalar_lea.vmem %s7, %s513
        $region60: #{tpu_custom_call.1} parent=27 // pred_fallthru
          _
        // Predicated region
        $region61: #{tpu_custom_call.1} parent=27 // pred_check
          %p515 = pneg %p273
        $region62: #{tpu_custom_call.1} parent=27 // pred_check_branch
          %517 = sbr.rel (%p515) target = $region64
        $region63: #{tpu_custom_call.1} parent=27 // pred_region
          %p518 = scmp.lt.s32.totalorder %s34, 1
          %s519 = scalar_select %p518, %s34, 1
          %p520 = scmp.lt.s32.totalorder %s35, 1
          %s521 = scalar_select %p520, %s35, 1
          %s522 = smul.addr %s521, 2
          %s523 = smul.addr %s519, 4
          %s524 = sadd.s32 %s522, %s523
          %s525 = scalar_lea.vmem %s8, %s524
        $region64: #{tpu_custom_call.1} parent=27 // pred_fallthru
          _
      $region28: #{tpu_custom_call.1} parent=5 // pred_fallthru
        _
      %p526 = scmp.le.s32.totalorder 1, %s27
      %p527 = scmp.lt.s32.totalorder %s27, 5
      %p528 = pnand %p526, %p527
      %p529 = pneg %p528
      // Predicated region
      $region65: #{tpu_custom_call.1} parent=5 // pred_check
        _
      $region66: #{tpu_custom_call.1} parent=5 // pred_check_branch
        %531 = sbr.rel (%p528) target = $region68
      $region67: #{tpu_custom_call.1} parent=5 // pred_region
        %s532 = ssub.s32 %s27, 1
        %s533 = sand.u32 %s54, 1
        %s534 = scalar_lea.sflag [#allocation3], %s533
        %s535 = sand.u32 %s54, 1
        %s536 = smul.addr %s535, 128
        %s537 = scalar_lea.vmem [#allocation2], %s536
        // Predicated region
        $region69: #{tpu_custom_call.1} parent=67 // pred_check
          %p538 = pneg %p67
        $region70: #{tpu_custom_call.1} parent=67 // pred_check_branch
          %540 = sbr.rel (%p538) target = $region72
        $region71: #{tpu_custom_call.1} parent=67 // pred_region
          %541 = dma.done %s534, 2048
        $region72: #{tpu_custom_call.1} parent=67 // pred_fallthru
          _
        // Predicated region
        $region73: #{tpu_custom_call.1} parent=67 // pred_check
          %p542 = pneg %p300
        $region74: #{tpu_custom_call.1} parent=67 // pred_check_branch
          %544 = sbr.rel (%p542) target = $region76
        $region75: #{tpu_custom_call.1} parent=67 // pred_region
          %545 = dma.done [#allocation6], 8192
        $region76: #{tpu_custom_call.1} parent=67 // pred_fallthru
          _
        %s546 = sand.u32 %s54, 1
        %s547 = scalar_lea.sflag [#allocation3], %s546
        %s548 = sand.u32 %s54, 1
        %s549 = smul.addr %s548, 128
        %s550 = scalar_lea.vmem [#allocation2], %s549
        %p551 = pneg %p67
        %p552 = pneg %p64
        %p553 = scmp.lt.s32.totalorder %s36, 1
        %s554 = scalar_select %p553, %s36, 1
        %s555 = smul.addr %s554, 8
        %s556 = smul.addr %s555, 8
        %s557 = scalar_lea.vmem %s1, %s556
        %p558 = pneg %p93
        %p559 = pneg %p90
        %p560 = scmp.lt.s32.totalorder %s36, 1
        %s561 = scalar_select %p560, %s36, 1
        %s562 = smul.addr %s561, 8
        %s563 = smul.addr %s562, 8
        %s564 = scalar_lea.vmem %s2, %s563
        %p565 = pneg %p119
        %p566 = pneg %p116
        %p567 = scmp.lt.s32.totalorder %s36, 1
        %s568 = scalar_select %p567, %s36, 1
        %s569 = smul.addr %s568, 2
        %s570 = smul.addr %s569, 2
        %s571 = scalar_lea.vmem %s3, %s570
        %p572 = pneg %p145
        %p573 = pneg %p142
        %p574 = scmp.lt.s32.totalorder %s36, 1
        %s575 = scalar_select %p574, %s36, 1
        %s576 = smul.addr %s575, 2
        %s577 = smul.addr %s576, 2
        %s578 = scalar_lea.vmem %s4, %s577
        %p579 = pneg %p171
        %p580 = pneg %p168
        %p581 = scmp.lt.s32.totalorder %s36, 1
        %s582 = scalar_select %p581, %s36, 1
        %s583 = smul.addr %s582, 4
        %s584 = smul.addr %s583, 8
        %s585 = scalar_lea.vmem %s5, %s584
        %p586 = pneg %p197
        %p587 = pneg %p194
        %p588 = scmp.lt.s32.totalorder %s36, 1
        %s589 = scalar_select %p588, %s36, 1
        %s590 = smul.addr %s589, 4
        %s591 = smul.addr %s590, 8
        %s592 = scalar_lea.vmem %s6, %s591
        %p593 = pneg %p223
        %p594 = pneg %p220
        %p595 = scmp.lt.s32.totalorder %s36, 1
        %s596 = scalar_select %p595, %s36, 1
        %p597 = scmp.lt.s32.totalorder %s37, 1
        %s598 = scalar_select %p597, %s37, 1
        %s599 = smul.addr %s596, 2
        %s600 = sadd.s32 %s598, %s599
        %s601 = scalar_lea.vmem %s7, %s600
        %p602 = pneg %p251
        %p603 = pneg %p248
        %p604 = scmp.lt.s32.totalorder %s36, 1
        %s605 = scalar_select %p604, %s36, 1
        %p606 = scmp.lt.s32.totalorder %s37, 1
        %s607 = scalar_select %p606, %s37, 1
        %s608 = smul.addr %s607, 2
        %s609 = smul.addr %s605, 4
        %s610 = sadd.s32 %s608, %s609
        %s611 = scalar_lea.vmem %s8, %s610
        %p612 = pneg %p279
        %p613 = pneg %p276
        %p614 = pneg %p300
        %p615 = pneg %p297
        %p616 = pneg %p321
        %p617 = pneg %p318
        %p618 = pneg %p342
        %p619 = pneg %p339
        %p620 = pneg %p368
        %p621 = pneg %p365
        %p622 = scmp.lt.s32.totalorder %s36, 1
        %s623 = scalar_select %p622, %s36, 1
        %s624 = smul.addr %s623, 4
        %s625 = smul.addr %s624, 8
        %s626 = scalar_lea.vmem %s12, %s625
        %p627 = pneg %p396
        %p628 = pneg %p393
        %s629 = sand.u32 %s383, 1
        %s630 = scalar_lea.sflag [#allocation4], %s629
        %s631 = sand.u32 %s383, 1
        %s632 = smul.addr %s631, 32
        %s633 = scalar_lea.vmem [#allocation7], %s632
        %s634 = smul.u32 4, %s37
        %p635 = scmp.lt.s32.totalorder %s36, 1
        %s636 = scalar_select %p635, %s36, 1
        %s637 = smul.addr %s636, 8
        %s638 = smul.addr %s637, 8
        %s639 = scalar_lea.vmem %s1, %s638
        %p640 = scmp.lt.s32.totalorder %s36, 1
        %s641 = scalar_select %p640, %s36, 1
        %s642 = smul.addr %s641, 8
        %s643 = smul.addr %s642, 8
        %s644 = scalar_lea.vmem %s2, %s643
        %p645 = scmp.lt.s32.totalorder %s36, 1
        %s646 = scalar_select %p645, %s36, 1
        %s647 = smul.addr %s646, 2
        %s648 = smul.addr %s647, 2
        %s649 = scalar_lea.vmem %s3, %s648
        %p650 = scmp.lt.s32.totalorder %s36, 1
        %s651 = scalar_select %p650, %s36, 1
        %s652 = smul.addr %s651, 2
        %s653 = smul.addr %s652, 2
        %s654 = scalar_lea.vmem %s4, %s653
        %p655 = scmp.lt.s32.totalorder %s36, 1
        %s656 = scalar_select %p655, %s36, 1
        %s657 = smul.addr %s656, 4
        %s658 = smul.addr %s657, 8
        %s659 = scalar_lea.vmem %s5, %s658
        %p660 = scmp.lt.s32.totalorder %s36, 1
        %s661 = scalar_select %p660, %s36, 1
        %s662 = smul.addr %s661, 4
        %s663 = smul.addr %s662, 8
        %s664 = scalar_lea.vmem %s6, %s663
        %p665 = scmp.lt.s32.totalorder %s36, 1
        %s666 = scalar_select %p665, %s36, 1
        %p667 = scmp.lt.s32.totalorder %s37, 1
        %s668 = scalar_select %p667, %s37, 1
        %s669 = smul.addr %s666, 2
        %s670 = sadd.s32 %s668, %s669
        %s671 = scalar_lea.vmem %s7, %s670
        %p672 = scmp.lt.s32.totalorder %s36, 1
        %s673 = scalar_select %p672, %s36, 1
        %p674 = scmp.lt.s32.totalorder %s37, 1
        %s675 = scalar_select %p674, %s37, 1
        %s676 = smul.addr %s675, 2
        %s677 = smul.addr %s673, 4
        %s678 = sadd.s32 %s676, %s677
        %s679 = scalar_lea.vmem %s8, %s678
        %p680 = scmp.lt.s32.totalorder %s36, 1
        %s681 = scalar_select %p680, %s36, 1
        %s682 = smul.addr %s681, 4
        %s683 = smul.addr %s682, 8
        %s684 = scalar_lea.vmem %s12, %s683
        %s685 = smul.u32 2, %s37
        %p686 = scmp.eq.s32.totalorder %s37, 0
        // Predicated region
        $region77: #{tpu_custom_call.1} parent=67 // pred_check
          %p687 = pneg %p686
        $region78: #{tpu_custom_call.1} parent=67 // pred_check_branch
          %689 = sbr.rel (%p687) target = $region80
        $region79: #{tpu_custom_call.1} parent=67 // pred_region
          %vm690 = vcmask 130048
          %691 = vst.msk [vmem:[%s684] sm:$0xff] %vm690, 0.0
          %692 = vst.msk [vmem:[%s684 + $0x8] sm:$0xff] %vm690, 0.0
          %693 = vst.msk [vmem:[%s684 + $0x10] sm:$0xff] %vm690, 0.0
          %694 = vst.msk [vmem:[%s684 + $0x18] sm:$0xff] %vm690, 0.0
        $region80: #{tpu_custom_call.1} parent=67 // pred_fallthru
          _
        %v695 = vld [vmem:[%s664] sm:$0xff]
        %v696 = vld [vmem:[%s664 + $0x8] sm:$0xff]
        %v697 = vld [vmem:[%s664 + $0x10] sm:$0xff]
        %v698 = vld [vmem:[%s664 + $0x18] sm:$0xff]
        %v699 = vld [vmem:[%s671] sm:$0x1]
        %v700 = vld [vmem:[%s679] sm:$0x3]
        %v701 = vld [vmem:[%s537] sm:$0xff]
        %v702 = vld [vmem:[%s537 + $0x8] sm:$0xff]
        %v703 = vld [vmem:[%s537 + $0x10] sm:$0xff]
        %v704 = vld [vmem:[%s537 + $0x18] sm:$0xff]
        %v705 = vld [vmem:[%s537 + $0x20] sm:$0xff]
        %v706 = vld [vmem:[%s537 + $0x28] sm:$0xff]
        %v707 = vld [vmem:[%s537 + $0x30] sm:$0xff]
        %v708 = vld [vmem:[%s537 + $0x38] sm:$0xff]
        %v709 = vld [vmem:[%s537 + $0x40] sm:$0xff]
        %v710 = vld [vmem:[%s537 + $0x48] sm:$0xff]
        %v711 = vld [vmem:[%s537 + $0x50] sm:$0xff]
        %v712 = vld [vmem:[%s537 + $0x58] sm:$0xff]
        %v713 = vld [vmem:[%s537 + $0x60] sm:$0xff]
        %v714 = vld [vmem:[%s537 + $0x68] sm:$0xff]
        %v715 = vld [vmem:[%s537 + $0x70] sm:$0xff]
        %v716 = vld [vmem:[%s537 + $0x78] sm:$0xff]
        %v717 = vpack.c.bf16 %v705, %v701
        %v718 = vpack.c.bf16 %v706, %v702
        %v719 = vpack.c.bf16 %v707, %v703
        %v720 = vpack.c.bf16 %v708, %v704
        %v721 = vpack.c.bf16 %v713, %v709
        %v722 = vpack.c.bf16 %v714, %v710
        %v723 = vpack.c.bf16 %v715, %v711
        %v724 = vpack.c.bf16 %v716, %v712
        %v725 = vld [vmem:[#allocation5] sm:$0xff]
        %v726 = vld [vmem:[#allocation5 + $0x8] sm:$0xff]
        %v727 = vld [vmem:[#allocation5 + $0x10] sm:$0xff]
        %v728 = vld [vmem:[#allocation5 + $0x18] sm:$0xff]
        %v729 = vld [vmem:[#allocation5 + $0x20] sm:$0xff]
        %v730 = vld [vmem:[#allocation5 + $0x28] sm:$0xff]
        %v731 = vld [vmem:[#allocation5 + $0x30] sm:$0xff]
        %v732 = vld [vmem:[#allocation5 + $0x38] sm:$0xff]
        %v733 = vld [vmem:[#allocation5 + $0x40] sm:$0xff]
        %v734 = vld [vmem:[#allocation5 + $0x48] sm:$0xff]
        %v735 = vld [vmem:[#allocation5 + $0x50] sm:$0xff]
        %v736 = vld [vmem:[#allocation5 + $0x58] sm:$0xff]
        %v737 = vld [vmem:[#allocation5 + $0x60] sm:$0xff]
        %v738 = vld [vmem:[#allocation5 + $0x68] sm:$0xff]
        %v739 = vld [vmem:[#allocation5 + $0x70] sm:$0xff]
        %v740 = vld [vmem:[#allocation5 + $0x78] sm:$0xff]
        %v741 = vld [vmem:[#allocation5 + $0x80] sm:$0xff]
        %v742 = vld [vmem:[#allocation5 + $0x88] sm:$0xff]
        %v743 = vld [vmem:[#allocation5 + $0x90] sm:$0xff]
        %v744 = vld [vmem:[#allocation5 + $0x98] sm:$0xff]
        %v745 = vld [vmem:[#allocation5 + $0xa0] sm:$0xff]
        %v746 = vld [vmem:[#allocation5 + $0xa8] sm:$0xff]
        %v747 = vld [vmem:[#allocation5 + $0xb0] sm:$0xff]
        %v748 = vld [vmem:[#allocation5 + $0xb8] sm:$0xff]
        %v749 = vld [vmem:[#allocation5 + $0xc0] sm:$0xff]
        %v750 = vld [vmem:[#allocation5 + $0xc8] sm:$0xff]
        %v751 = vld [vmem:[#allocation5 + $0xd0] sm:$0xff]
        %v752 = vld [vmem:[#allocation5 + $0xd8] sm:$0xff]
        %v753 = vld [vmem:[#allocation5 + $0xe0] sm:$0xff]
        %v754 = vld [vmem:[#allocation5 + $0xe8] sm:$0xff]
        %v755 = vld [vmem:[#allocation5 + $0xf0] sm:$0xff]
        %v756 = vld [vmem:[#allocation5 + $0xf8] sm:$0xff]
        %v757 = vld [vmem:[#allocation5 + $0x100] sm:$0xff]
        %v758 = vld [vmem:[#allocation5 + $0x108] sm:$0xff]
        %v759 = vld [vmem:[#allocation5 + $0x110] sm:$0xff]
        %v760 = vld [vmem:[#allocation5 + $0x118] sm:$0xff]
        %v761 = vld [vmem:[#allocation5 + $0x120] sm:$0xff]
        %v762 = vld [vmem:[#allocation5 + $0x128] sm:$0xff]
        %v763 = vld [vmem:[#allocation5 + $0x130] sm:$0xff]
        %v764 = vld [vmem:[#allocation5 + $0x138] sm:$0xff]
        %v765 = vld [vmem:[#allocation5 + $0x140] sm:$0xff]
        %v766 = vld [vmem:[#allocation5 + $0x148] sm:$0xff]
        %v767 = vld [vmem:[#allocation5 + $0x150] sm:$0xff]
        %v768 = vld [vmem:[#allocation5 + $0x158] sm:$0xff]
        %v769 = vld [vmem:[#allocation5 + $0x160] sm:$0xff]
        %v770 = vld [vmem:[#allocation5 + $0x168] sm:$0xff]
        %v771 = vld [vmem:[#allocation5 + $0x170] sm:$0xff]
        %v772 = vld [vmem:[#allocation5 + $0x178] sm:$0xff]
        %v773 = vld [vmem:[#allocation5 + $0x180] sm:$0xff]
        %v774 = vld [vmem:[#allocation5 + $0x188] sm:$0xff]
        %v775 = vld [vmem:[#allocation5 + $0x190] sm:$0xff]
        %v776 = vld [vmem:[#allocation5 + $0x198] sm:$0xff]
        %v777 = vld [vmem:[#allocation5 + $0x1a0] sm:$0xff]
        %v778 = vld [vmem:[#allocation5 + $0x1a8] sm:$0xff]
        %v779 = vld [vmem:[#allocation5 + $0x1b0] sm:$0xff]
        %v780 = vld [vmem:[#allocation5 + $0x1b8] sm:$0xff]
        %v781 = vld [vmem:[#allocation5 + $0x1c0] sm:$0xff]
        %v782 = vld [vmem:[#allocation5 + $0x1c8] sm:$0xff]
        %v783 = vld [vmem:[#allocation5 + $0x1d0] sm:$0xff]
        %v784 = vld [vmem:[#allocation5 + $0x1d8] sm:$0xff]
        %v785 = vld [vmem:[#allocation5 + $0x1e0] sm:$0xff]
        %v786 = vld [vmem:[#allocation5 + $0x1e8] sm:$0xff]
        %v787 = vld [vmem:[#allocation5 + $0x1f0] sm:$0xff]
        %v788 = vld [vmem:[#allocation5 + $0x1f8] sm:$0xff]
        %v789 = vld [vmem:[%s10] sm:$0x3]
        %v791 = vlaneseq
        %v792 = vshrl.u32 %v791, 7
        %v793 = vsub.s32 0, %v792
        %v794 = vrot.slane %v789, %v793
        %v795 = vlaneseq
        %v796 = vshrl.u32 %v795, 7
        %v797 = vsub.s32 1, %v796
        %v798 = vrot.slane %v789, %v797
        %v865 = vunpack.c.l.b16 %v725
        %v866 = vunpack.c.h.b16 %v725
        %v867 = vunpack.c.l.b16 %v726
        %v868 = vunpack.c.h.b16 %v726
        %v869 = vunpack.c.l.b16 %v727
        %v870 = vunpack.c.h.b16 %v727
        %v871 = vunpack.c.l.b16 %v728
        %v872 = vunpack.c.h.b16 %v728
        %v873 = vunpack.c.l.b16 %v729
        %v874 = vunpack.c.h.b16 %v729
        %v875 = vunpack.c.l.b16 %v730
        %v876 = vunpack.c.h.b16 %v730
        %v877 = vunpack.c.l.b16 %v731
        %v878 = vunpack.c.h.b16 %v731
        %v879 = vunpack.c.l.b16 %v732
        %v880 = vunpack.c.h.b16 %v732
        %v881 = vunpack.c.l.b16 %v733
        %v882 = vunpack.c.h.b16 %v733
        %v883 = vunpack.c.l.b16 %v734
        %v884 = vunpack.c.h.b16 %v734
        %v885 = vunpack.c.l.b16 %v735
        %v886 = vunpack.c.h.b16 %v735
        %v887 = vunpack.c.l.b16 %v736
        %v888 = vunpack.c.h.b16 %v736
        %v889 = vunpack.c.l.b16 %v737
        %v890 = vunpack.c.h.b16 %v737
        %v891 = vunpack.c.l.b16 %v738
        %v892 = vunpack.c.h.b16 %v738
        %v893 = vunpack.c.l.b16 %v739
        %v894 = vunpack.c.h.b16 %v739
        %v895 = vunpack.c.l.b16 %v740
        %v896 = vunpack.c.h.b16 %v740
        %v897 = vunpack.c.l.b16 %v741
        %v898 = vunpack.c.h.b16 %v741
        %v899 = vunpack.c.l.b16 %v742
        %v900 = vunpack.c.h.b16 %v742
        %v901 = vunpack.c.l.b16 %v743
        %v902 = vunpack.c.h.b16 %v743
        %v903 = vunpack.c.l.b16 %v744
        %v904 = vunpack.c.h.b16 %v744
        %v905 = vunpack.c.l.b16 %v745
        %v906 = vunpack.c.h.b16 %v745
        %v907 = vunpack.c.l.b16 %v746
        %v908 = vunpack.c.h.b16 %v746
        %v909 = vunpack.c.l.b16 %v747
        %v910 = vunpack.c.h.b16 %v747
        %v911 = vunpack.c.l.b16 %v748
        %v912 = vunpack.c.h.b16 %v748
        %v913 = vunpack.c.l.b16 %v749
        %v914 = vunpack.c.h.b16 %v749
        %v915 = vunpack.c.l.b16 %v750
        %v916 = vunpack.c.h.b16 %v750
        %v917 = vunpack.c.l.b16 %v751
        %v918 = vunpack.c.h.b16 %v751
        %v919 = vunpack.c.l.b16 %v752
        %v920 = vunpack.c.h.b16 %v752
        %v921 = vunpack.c.l.b16 %v753
        %v922 = vunpack.c.h.b16 %v753
        %v923 = vunpack.c.l.b16 %v754
        %v924 = vunpack.c.h.b16 %v754
        %v925 = vunpack.c.l.b16 %v755
        %v926 = vunpack.c.h.b16 %v755
        %v927 = vunpack.c.l.b16 %v756
        %v928 = vunpack.c.h.b16 %v756
        %v929 = vunpack.c.l.b16 %v757
        %v930 = vunpack.c.h.b16 %v757
        %v931 = vunpack.c.l.b16 %v758
        %v932 = vunpack.c.h.b16 %v758
        %v933 = vunpack.c.l.b16 %v759
        %v934 = vunpack.c.h.b16 %v759
        %v935 = vunpack.c.l.b16 %v760
        %v936 = vunpack.c.h.b16 %v760
        %v937 = vunpack.c.l.b16 %v761
        %v938 = vunpack.c.h.b16 %v761
        %v939 = vunpack.c.l.b16 %v762
        %v940 = vunpack.c.h.b16 %v762
        %v941 = vunpack.c.l.b16 %v763
        %v942 = vunpack.c.h.b16 %v763
        %v943 = vunpack.c.l.b16 %v764
        %v944 = vunpack.c.h.b16 %v764
        %v945 = vunpack.c.l.b16 %v765
        %v946 = vunpack.c.h.b16 %v765
        %v947 = vunpack.c.l.b16 %v766
        %v948 = vunpack.c.h.b16 %v766
        %v949 = vunpack.c.l.b16 %v767
        %v950 = vunpack.c.h.b16 %v767
        %v951 = vunpack.c.l.b16 %v768
        %v952 = vunpack.c.h.b16 %v768
        %v953 = vunpack.c.l.b16 %v769
        %v954 = vunpack.c.h.b16 %v769
        %v955 = vunpack.c.l.b16 %v770
        %v956 = vunpack.c.h.b16 %v770
        %v957 = vunpack.c.l.b16 %v771
        %v958 = vunpack.c.h.b16 %v771
        %v959 = vunpack.c.l.b16 %v772
        %v960 = vunpack.c.h.b16 %v772
        %v961 = vunpack.c.l.b16 %v773
        %v962 = vunpack.c.h.b16 %v773
        %v963 = vunpack.c.l.b16 %v774
        %v964 = vunpack.c.h.b16 %v774
        %v965 = vunpack.c.l.b16 %v775
        %v966 = vunpack.c.h.b16 %v775
        %v967 = vunpack.c.l.b16 %v776
        %v968 = vunpack.c.h.b16 %v776
        %v969 = vunpack.c.l.b16 %v777
        %v970 = vunpack.c.h.b16 %v777
        %v971 = vunpack.c.l.b16 %v778
        %v972 = vunpack.c.h.b16 %v778
        %v973 = vunpack.c.l.b16 %v779
        %v974 = vunpack.c.h.b16 %v779
        %v975 = vunpack.c.l.b16 %v780
        %v976 = vunpack.c.h.b16 %v780
        %v977 = vunpack.c.l.b16 %v781
        %v978 = vunpack.c.h.b16 %v781
        %v979 = vunpack.c.l.b16 %v782
        %v980 = vunpack.c.h.b16 %v782
        %v981 = vunpack.c.l.b16 %v783
        %v982 = vunpack.c.h.b16 %v783
        %v983 = vunpack.c.l.b16 %v784
        %v984 = vunpack.c.h.b16 %v784
        %v985 = vunpack.c.l.b16 %v785
        %v986 = vunpack.c.h.b16 %v785
        %v987 = vunpack.c.l.b16 %v786
        %v988 = vunpack.c.h.b16 %v786
        %v989 = vunpack.c.l.b16 %v787
        %v990 = vunpack.c.h.b16 %v787
        %v991 = vunpack.c.l.b16 %v788
        %v992 = vunpack.c.h.b16 %v788
        %v993 = vpack.c.b16 %v867, %v865
        %v994 = vpack.c.b16 %v868, %v866
        %v995 = vpack.c.b16 %v871, %v869
        %v996 = vpack.c.b16 %v872, %v870
        %v997 = vpack.c.b16 %v875, %v873
        %v998 = vpack.c.b16 %v876, %v874
        %v999 = vpack.c.b16 %v879, %v877
        %v1000 = vpack.c.b16 %v880, %v878
        %v1001 = vpack.c.b16 %v883, %v881
        %v1002 = vpack.c.b16 %v884, %v882
        %v1003 = vpack.c.b16 %v887, %v885
        %v1004 = vpack.c.b16 %v888, %v886
        %v1005 = vpack.c.b16 %v891, %v889
        %v1006 = vpack.c.b16 %v892, %v890
        %v1007 = vpack.c.b16 %v895, %v893
        %v1008 = vpack.c.b16 %v896, %v894
        %v1009 = vpack.c.b16 %v899, %v897
        %v1010 = vpack.c.b16 %v900, %v898
        %v1011 = vpack.c.b16 %v903, %v901
        %v1012 = vpack.c.b16 %v904, %v902
        %v1013 = vpack.c.b16 %v907, %v905
        %v1014 = vpack.c.b16 %v908, %v906
        %v1015 = vpack.c.b16 %v911, %v909
        %v1016 = vpack.c.b16 %v912, %v910
        %v1017 = vpack.c.b16 %v915, %v913
        %v1018 = vpack.c.b16 %v916, %v914
        %v1019 = vpack.c.b16 %v919, %v917
        %v1020 = vpack.c.b16 %v920, %v918
        %v1021 = vpack.c.b16 %v923, %v921
        %v1022 = vpack.c.b16 %v924, %v922
        %v1023 = vpack.c.b16 %v927, %v925
        %v1024 = vpack.c.b16 %v928, %v926
        %v1025 = vpack.c.b16 %v931, %v929
        %v1026 = vpack.c.b16 %v932, %v930
        %v1027 = vpack.c.b16 %v935, %v933
        %v1028 = vpack.c.b16 %v936, %v934
        %v1029 = vpack.c.b16 %v939, %v937
        %v1030 = vpack.c.b16 %v940, %v938
        %v1031 = vpack.c.b16 %v943, %v941
        %v1032 = vpack.c.b16 %v944, %v942
        %v1033 = vpack.c.b16 %v947, %v945
        %v1034 = vpack.c.b16 %v948, %v946
        %v1035 = vpack.c.b16 %v951, %v949
        %v1036 = vpack.c.b16 %v952, %v950
        %v1037 = vpack.c.b16 %v955, %v953
        %v1038 = vpack.c.b16 %v956, %v954
        %v1039 = vpack.c.b16 %v959, %v957
        %v1040 = vpack.c.b16 %v960, %v958
        %v1041 = vpack.c.b16 %v963, %v961
        %v1042 = vpack.c.b16 %v964, %v962
        %v1043 = vpack.c.b16 %v967, %v965
        %v1044 = vpack.c.b16 %v968, %v966
        %v1045 = vpack.c.b16 %v971, %v969
        %v1046 = vpack.c.b16 %v972, %v970
        %v1047 = vpack.c.b16 %v975, %v973
        %v1048 = vpack.c.b16 %v976, %v974
        %v1049 = vpack.c.b16 %v979, %v977
        %v1050 = vpack.c.b16 %v980, %v978
        %v1051 = vpack.c.b16 %v983, %v981
        %v1052 = vpack.c.b16 %v984, %v982
        %v1053 = vpack.c.b16 %v987, %v985
        %v1054 = vpack.c.b16 %v988, %v986
        %v1055 = vpack.c.b16 %v991, %v989
        %v1056 = vpack.c.b16 %v992, %v990
        %1121 = vmatprep.subr.bf16.mxu0 %v1008
        %1122 = vmatpush1.bf16.msra.mxu0 %v1007
        %1123 = vmatprep.subr.bf16.mxu0 %v1006
        %1124 = vmatpush1.bf16.msra.mxu0 %v1005
        %1125 = vmatprep.subr.bf16.mxu0 %v1004
        %1126 = vmatpush1.bf16.msra.mxu0 %v1003
        %1127 = vmatprep.subr.bf16.mxu0 %v1002
        %1128 = vmatpush1.bf16.msra.mxu0 %v1001
        %1129 = vmatprep.subr.bf16.mxu0 %v1000
        %1130 = vmatpush1.bf16.msra.mxu0 %v999
        %1131 = vmatprep.subr.bf16.mxu0 %v998
        %1132 = vmatpush1.bf16.msra.mxu0 %v997
        %1133 = vmatprep.subr.bf16.mxu0 %v996
        %1134 = vmatpush1.bf16.msra.mxu0 %v995
        %1135 = vmatprep.subr.bf16.mxu0 %v994
        %1136 = vmatpush1.bf16.msra.mxu0 %v993
        %1137 = vmatprep.subr.bf16.mxu0 %v1024
        %1138 = vmatpush2.bf16.msra.mxu0 %v1023
        %1139 = vmatprep.subr.bf16.mxu0 %v1022
        %1140 = vmatpush2.bf16.msra.mxu0 %v1021
        %1141 = vmatprep.subr.bf16.mxu0 %v1020
        %1142 = vmatpush2.bf16.msra.mxu0 %v1019
        %1143 = vmatprep.subr.bf16.mxu0 %v1018
        %1144 = vmatpush2.bf16.msra.mxu0 %v1017
        %1145 = vmatprep.subr.bf16.mxu0 %v1016
        %1146 = vmatpush2.bf16.msra.mxu0 %v1015
        %1147 = vmatprep.subr.bf16.mxu0 %v1014
        %1148 = vmatpush2.bf16.msra.mxu0 %v1013
        %1149 = vmatprep.subr.bf16.mxu0 %v1012
        %1150 = vmatpush2.bf16.msra.mxu0 %v1011
        %1151 = vmatprep.subr.bf16.mxu0 %v1010
        %1152 = vmatpush2.bf16.msra.mxu0 %v1009
        %1153 = vmatprep.mubr.bf16.mxu0 %v718
        %1154 = vmatmul.mubr.bf16.gmra.mxu0 %v717
        %v1155 = vpop.f32.mrf.mxu0
        %v1156 = vadd.f32 %v794, %v1155
        %v1157 = vpop.f32.mrf.mxu0
        %v1158 = vadd.f32 %v798, %v1157
        %v1159 = vpop.f32.mrf.mxu0
        %v1160 = vadd.f32 %v794, %v1159
        %v1161 = vpop.f32.mrf.mxu0
        %v1162 = vadd.f32 %v798, %v1161
        %1163 = vmatprep.mubr.bf16.mxu0 %v722
        %1164 = vmatmul.mubr.bf16.gmra.mxu0 %v721
        %v1165 = vpop.f32.mrf.mxu0
        %v1166 = vadd.f32 %v794, %v1165
        %v1167 = vpop.f32.mrf.mxu0
        %v1168 = vadd.f32 %v798, %v1167
        %v1169 = vpop.f32.mrf.mxu0
        %v1170 = vadd.f32 %v794, %v1169
        %v1171 = vpop.f32.mrf.mxu0
        %v1172 = vadd.f32 %v798, %v1171
        %1173 = vdwg.mxu0
        %1174 = vmatprep.subr.bf16.mxu0 %v1040
        %1175 = vmatpush1.bf16.msra.mxu0 %v1039
        %1176 = vmatprep.subr.bf16.mxu0 %v1038
        %1177 = vmatpush1.bf16.msra.mxu0 %v1037
        %1178 = vmatprep.subr.bf16.mxu0 %v1036
        %1179 = vmatpush1.bf16.msra.mxu0 %v1035
        %1180 = vmatprep.subr.bf16.mxu0 %v1034
        %1181 = vmatpush1.bf16.msra.mxu0 %v1033
        %1182 = vmatprep.subr.bf16.mxu0 %v1032
        %1183 = vmatpush1.bf16.msra.mxu0 %v1031
        %1184 = vmatprep.subr.bf16.mxu0 %v1030
        %1185 = vmatpush1.bf16.msra.mxu0 %v1029
        %1186 = vmatprep.subr.bf16.mxu0 %v1028
        %1187 = vmatpush1.bf16.msra.mxu0 %v1027
        %1188 = vmatprep.subr.bf16.mxu0 %v1026
        %1189 = vmatpush1.bf16.msra.mxu0 %v1025
        %1190 = vmatprep.subr.bf16.mxu0 %v1056
        %1191 = vmatpush2.bf16.msra.mxu0 %v1055
        %1192 = vmatprep.subr.bf16.mxu0 %v1054
        %1193 = vmatpush2.bf16.msra.mxu0 %v1053
        %1194 = vmatprep.subr.bf16.mxu0 %v1052
        %1195 = vmatpush2.bf16.msra.mxu0 %v1051
        %1196 = vmatprep.subr.bf16.mxu0 %v1050
        %1197 = vmatpush2.bf16.msra.mxu0 %v1049
        %1198 = vmatprep.subr.bf16.mxu0 %v1048
        %1199 = vmatpush2.bf16.msra.mxu0 %v1047
        %1200 = vmatprep.subr.bf16.mxu0 %v1046
        %1201 = vmatpush2.bf16.msra.mxu0 %v1045
        %1202 = vmatprep.subr.bf16.mxu0 %v1044
        %1203 = vmatpush2.bf16.msra.mxu0 %v1043
        %1204 = vmatprep.subr.bf16.mxu0 %v1042
        %1205 = vmatpush2.bf16.msra.mxu0 %v1041
        %1206 = vmatprep.mubr.bf16.mxu0 %v720
        %1207 = vmatmul.mubr.bf16.gmra.mxu0 %v719
        %v1208 = vpop.f32.mrf.mxu0
        %v1209 = vadd.f32 %v1156, %v1208
        %v1210 = vpop.f32.mrf.mxu0
        %v1211 = vadd.f32 %v1158, %v1210
        %v1212 = vpop.f32.mrf.mxu0
        %v1213 = vadd.f32 %v1160, %v1212
        %v1214 = vpop.f32.mrf.mxu0
        %v1215 = vadd.f32 %v1162, %v1214
        %1216 = vmatprep.mubr.bf16.mxu0 %v724
        %1217 = vmatmul.mubr.bf16.gmra.mxu0 %v723
        %v1218 = vpop.f32.mrf.mxu0
        %v1219 = vadd.f32 %v1166, %v1218
        %v1220 = vpop.f32.mrf.mxu0
        %v1221 = vadd.f32 %v1168, %v1220
        %v1222 = vpop.f32.mrf.mxu0
        %v1223 = vadd.f32 %v1170, %v1222
        %v1224 = vpop.f32.mrf.mxu0
        %v1225 = vadd.f32 %v1172, %v1224
        %1226 = vdwg.mxu0
        %s1227 = sshra.s32 %s37, 1
        %s1228 = sand.u32 %s37, 1
        %s1229 = sshra.s32 %s37, 1
        %s1230 = sand.u32 %s37, 1
        %s1231 = smul.u32 %s1227, 2
        %s1232 = smul.u32 %s1231, 2
        %s1233 = sadd.s32 %s1232, %s1230
        %s1234 = scalar_lea.vmem %s649, %s1233
        %v1235 = vld [vmem:[%s1234] ss:$2 sm:$0x3]
        %s1236 = scalar_lea.vmem %s654, %s1233
        %v1237 = vld [vmem:[%s1236] ss:$2 sm:$0x3]
        %v1238 = vld [vmem:[%s644] sm:$0xff]
        %v1239 = vld [vmem:[%s644 + $0x8] sm:$0xff]
        %v1240 = vld [vmem:[%s644 + $0x10] sm:$0xff]
        %v1241 = vld [vmem:[%s644 + $0x18] sm:$0xff]
        %v1242 = vld [vmem:[%s644 + $0x20] sm:$0xff]
        %v1243 = vld [vmem:[%s644 + $0x28] sm:$0xff]
        %v1244 = vld [vmem:[%s644 + $0x30] sm:$0xff]
        %v1245 = vld [vmem:[%s644 + $0x38] sm:$0xff]
        %v1247 = vlaneseq
        %v1248 = vshrl.u32 %v1247, 7
        %v1249 = vsub.s32 0, %v1248
        %v1250 = vrot.slane %v1237, %v1249
        %v1251 = vlaneseq
        %v1252 = vshrl.u32 %v1251, 7
        %v1253 = vsub.s32 1, %v1252
        %v1254 = vrot.slane %v1237, %v1253
        %v1257 = vadd.f32 %v1238, %v1250
        %v1258 = vadd.f32 %v1239, %v1254
        %v1259 = vadd.f32 %v1240, %v1250
        %v1260 = vadd.f32 %v1241, %v1254
        %v1261 = vadd.f32 %v1242, %v1250
        %v1262 = vadd.f32 %v1243, %v1254
        %v1263 = vadd.f32 %v1244, %v1250
        %v1264 = vadd.f32 %v1245, %v1254
        %v1265 = vadd.f32 %v1257, %v1209
        %v1266 = vadd.f32 %v1258, %v1211
        %v1267 = vadd.f32 %v1259, %v1213
        %v1268 = vadd.f32 %v1260, %v1215
        %v1269 = vadd.f32 %v1261, %v1219
        %v1270 = vadd.f32 %v1262, %v1221
        %v1271 = vadd.f32 %v1263, %v1223
        %v1272 = vadd.f32 %v1264, %v1225
        %v1273 = vld [vmem:[%s639] sm:$0xff]
        %v1274 = vld [vmem:[%s639 + $0x8] sm:$0xff]
        %v1275 = vld [vmem:[%s639 + $0x10] sm:$0xff]
        %v1276 = vld [vmem:[%s639 + $0x18] sm:$0xff]
        %v1277 = vld [vmem:[%s639 + $0x20] sm:$0xff]
        %v1278 = vld [vmem:[%s639 + $0x28] sm:$0xff]
        %v1279 = vld [vmem:[%s639 + $0x30] sm:$0xff]
        %v1280 = vld [vmem:[%s639 + $0x38] sm:$0xff]
        %v1282 = vlaneseq
        %v1283 = vshrl.u32 %v1282, 7
        %v1284 = vsub.s32 0, %v1283
        %v1285 = vrot.slane %v1235, %v1284
        %v1286 = vlaneseq
        %v1287 = vshrl.u32 %v1286, 7
        %v1288 = vsub.s32 1, %v1287
        %v1289 = vrot.slane %v1235, %v1288
        %v1292 = vmul.f32 %v1273, %v1285
        %v1293 = vmul.f32 %v1274, %v1289
        %v1294 = vmul.f32 %v1275, %v1285
        %v1295 = vmul.f32 %v1276, %v1289
        %v1296 = vmul.f32 %v1277, %v1285
        %v1297 = vmul.f32 %v1278, %v1289
        %v1298 = vmul.f32 %v1279, %v1285
        %v1299 = vmul.f32 %v1280, %v1289
        %v1300 = vmul.f32 %v1292, %v1265
        %v1301 = vmul.f32 %v1293, %v1266
        %v1302 = vmul.f32 %v1294, %v1267
        %v1303 = vmul.f32 %v1295, %v1268
        %v1304 = vmul.f32 %v1296, %v1269
        %v1305 = vmul.f32 %v1297, %v1270
        %v1306 = vmul.f32 %v1298, %v1271
        %v1307 = vmul.f32 %v1299, %v1272
        %v1308 = vld [vmem:[%s11] sm:$0xff]
        %v1309 = vld [vmem:[%s11 + $0x8] sm:$0xff]
        %v1310 = vld [vmem:[%s11 + $0x10] sm:$0xff]
        %v1311 = vld [vmem:[%s11 + $0x18] sm:$0xff]
        %v1312 = vld [vmem:[%s11 + $0x20] sm:$0xff]
        %v1313 = vld [vmem:[%s11 + $0x28] sm:$0xff]
        %v1314 = vld [vmem:[%s11 + $0x30] sm:$0xff]
        %v1315 = vld [vmem:[%s11 + $0x38] sm:$0xff]
        %v1316 = vld [vmem:[%s11 + $0x40] sm:$0xff]
        %v1317 = vld [vmem:[%s11 + $0x48] sm:$0xff]
        %v1318 = vld [vmem:[%s11 + $0x50] sm:$0xff]
        %v1319 = vld [vmem:[%s11 + $0x58] sm:$0xff]
        %v1320 = vld [vmem:[%s11 + $0x60] sm:$0xff]
        %v1321 = vld [vmem:[%s11 + $0x68] sm:$0xff]
        %v1322 = vld [vmem:[%s11 + $0x70] sm:$0xff]
        %v1323 = vld [vmem:[%s11 + $0x78] sm:$0xff]
        %v1324 = vld [vmem:[%s11 + $0x80] sm:$0xff]
        %v1325 = vld [vmem:[%s11 + $0x88] sm:$0xff]
        %v1326 = vld [vmem:[%s11 + $0x90] sm:$0xff]
        %v1327 = vld [vmem:[%s11 + $0x98] sm:$0xff]
        %v1328 = vld [vmem:[%s11 + $0xa0] sm:$0xff]
        %v1329 = vld [vmem:[%s11 + $0xa8] sm:$0xff]
        %v1330 = vld [vmem:[%s11 + $0xb0] sm:$0xff]
        %v1331 = vld [vmem:[%s11 + $0xb8] sm:$0xff]
        %v1332 = vld [vmem:[%s11 + $0xc0] sm:$0xff]
        %v1333 = vld [vmem:[%s11 + $0xc8] sm:$0xff]
        %v1334 = vld [vmem:[%s11 + $0xd0] sm:$0xff]
        %v1335 = vld [vmem:[%s11 + $0xd8] sm:$0xff]
        %v1336 = vld [vmem:[%s11 + $0xe0] sm:$0xff]
        %v1337 = vld [vmem:[%s11 + $0xe8] sm:$0xff]
        %v1338 = vld [vmem:[%s11 + $0xf0] sm:$0xff]
        %v1339 = vld [vmem:[%s11 + $0xf8] sm:$0xff]
        %1340 = vmatprep.subr.mxu0 0.0
        %1341 = vmatpush1.msra.mxu0 %v1323
        %1342 = vmatprep.subr.mxu0 0.0
        %1343 = vmatpush1.msra.mxu0 %v1322
        %1344 = vmatprep.subr.mxu0 0.0
        %1345 = vmatpush1.msra.mxu0 %v1321
        %1346 = vmatprep.subr.mxu0 0.0
        %1347 = vmatpush1.msra.mxu0 %v1320
        %1348 = vmatprep.subr.mxu0 0.0
        %1349 = vmatpush1.msra.mxu0 %v1319
        %1350 = vmatprep.subr.mxu0 0.0
        %1351 = vmatpush1.msra.mxu0 %v1318
        %1352 = vmatprep.subr.mxu0 0.0
        %1353 = vmatpush1.msra.mxu0 %v1317
        %1354 = vmatprep.subr.mxu0 0.0
        %1355 = vmatpush1.msra.mxu0 %v1316
        %1356 = vmatprep.subr.mxu0 0.0
        %1357 = vmatpush1.msra.mxu0 %v1315
        %1358 = vmatprep.subr.mxu0 0.0
        %1359 = vmatpush1.msra.mxu0 %v1314
        %1360 = vmatprep.subr.mxu0 0.0
        %1361 = vmatpush1.msra.mxu0 %v1313
        %1362 = vmatprep.subr.mxu0 0.0
        %1363 = vmatpush1.msra.mxu0 %v1312
        %1364 = vmatprep.subr.mxu0 0.0
        %1365 = vmatpush1.msra.mxu0 %v1311
        %1366 = vmatprep.subr.mxu0 0.0
        %1367 = vmatpush1.msra.mxu0 %v1310
        %1368 = vmatprep.subr.mxu0 0.0
        %1369 = vmatpush1.msra.mxu0 %v1309
        %1370 = vmatprep.subr.mxu0 0.0
        %1371 = vmatpush1.msra.mxu0 %v1308
        %1372 = vmatprep.subr.mxu0 0.0
        %1373 = vmatpush2.msra.mxu0 %v1339
        %1374 = vmatprep.subr.mxu0 0.0
        %1375 = vmatpush2.msra.mxu0 %v1338
        %1376 = vmatprep.subr.mxu0 0.0
        %1377 = vmatpush2.msra.mxu0 %v1337
        %1378 = vmatprep.subr.mxu0 0.0
        %1379 = vmatpush2.msra.mxu0 %v1336
        %1380 = vmatprep.subr.mxu0 0.0
        %1381 = vmatpush2.msra.mxu0 %v1335
        %1382 = vmatprep.subr.mxu0 0.0
        %1383 = vmatpush2.msra.mxu0 %v1334
        %1384 = vmatprep.subr.mxu0 0.0
        %1385 = vmatpush2.msra.mxu0 %v1333
        %1386 = vmatprep.subr.mxu0 0.0
        %1387 = vmatpush2.msra.mxu0 %v1332
        %1388 = vmatprep.subr.mxu0 0.0
        %1389 = vmatpush2.msra.mxu0 %v1331
        %1390 = vmatprep.subr.mxu0 0.0
        %1391 = vmatpush2.msra.mxu0 %v1330
        %1392 = vmatprep.subr.mxu0 0.0
        %1393 = vmatpush2.msra.mxu0 %v1329
        %1394 = vmatprep.subr.mxu0 0.0
        %1395 = vmatpush2.msra.mxu0 %v1328
        %1396 = vmatprep.subr.mxu0 0.0
        %1397 = vmatpush2.msra.mxu0 %v1327
        %1398 = vmatprep.subr.mxu0 0.0
        %1399 = vmatpush2.msra.mxu0 %v1326
        %1400 = vmatprep.subr.mxu0 0.0
        %1401 = vmatpush2.msra.mxu0 %v1325
        %1402 = vmatprep.subr.mxu0 0.0
        %1403 = vmatpush2.msra.mxu0 %v1324
        %1404 = vmatprep.mubr.f32.mxu0 %v1301
        %1405 = vmatmul.mubr.f32.gmra.mxu0 %v1300
        %v1406 = vpop.f32.mrf.mxu0
        %v1407 = vadd.f32 0.0, %v1406
        %v1408 = vpop.f32.mrf.mxu0
        %1409 = vmatprep.mubr.f32.mxu0 %v1303
        %1410 = vmatmul.mubr.f32.gmra.mxu0 %v1302
        %v1411 = vpop.f32.mrf.mxu0
        %v1412 = vadd.f32 0.0, %v1411
        %v1413 = vpop.f32.mrf.mxu0
        %1414 = vmatprep.mubr.f32.mxu0 %v1305
        %1415 = vmatmul.mubr.f32.gmra.mxu0 %v1304
        %v1416 = vpop.f32.mrf.mxu0
        %v1417 = vadd.f32 0.0, %v1416
        %v1418 = vpop.f32.mrf.mxu0
        %1419 = vmatprep.mubr.f32.mxu0 %v1307
        %1420 = vmatmul.mubr.f32.gmra.mxu0 %v1306
        %v1421 = vpop.f32.mrf.mxu0
        %v1422 = vadd.f32 0.0, %v1421
        %v1423 = vpop.f32.mrf.mxu0
        %1424 = vdwg.mxu0
        %1426 = vset.pattern.permute.xlu0 0
        %1427 = vperm.xlu0 %1426, %v695
        %v1428 = vpop.permute.xlu0 %1427
        %1431 = vset.pattern.permute.xlu0 0
        %1432 = vperm.xlu0 %1431, %v696
        %v1433 = vpop.permute.xlu0 %1432
        %1436 = vset.pattern.permute.xlu0 0
        %1437 = vperm.xlu0 %1436, %v697
        %v1438 = vpop.permute.xlu0 %1437
        %1441 = vset.pattern.permute.xlu0 0
        %1442 = vperm.xlu0 %1441, %v698
        %v1443 = vpop.permute.xlu0 %1442
        %v1446 = vlaneseq
        %v1447 = vshrl.u32 %v1446, 7
        %v1448 = vsub.s32 0, %v1447
        %v1449 = vrot.slane %v699, %v1448
        %v1451 = vmul.f32 %v1428, %v1449
        %v1452 = vmul.f32 %v1433, %v1449
        %v1453 = vmul.f32 %v1438, %v1449
        %v1454 = vmul.f32 %v1443, %v1449
        %vm1455 = vcmp.ne.f32.partialorder %v1451, 0.0
        %vm1456 = vcmp.ne.f32.partialorder %v1452, 0.0
        %vm1457 = vcmp.ne.f32.partialorder %v1453, 0.0
        %vm1458 = vcmp.ne.f32.partialorder %v1454, 0.0
        %v1459 = vsel %vm1455, %v1407, -1e+09
        %v1460 = vsel %vm1456, %v1412, -1e+09
        %v1461 = vsel %vm1457, %v1417, -1e+09
        %v1462 = vsel %vm1458, %v1422, -1e+09
        %vm1463 = vcmask 130048
        %v1464 = vsel %vm1463, %v1459, -inf
        %v1465 = vsel %vm1463, %v1460, -inf
        %v1466 = vsel %vm1463, %v1461, -inf
        %v1467 = vsel %vm1463, %v1462, -inf
        %v1468 = vmax.f32 %v1464, %v1465
        %v1469 = vmax.f32 %v1466, %v1467
        %v1470 = vmax.f32 %v1468, %v1469
        %v1471 = vrot.slane %v1470, 4
        %v1472 = vmax.f32 %v1470, %v1471
        %v1473 = vrot.slane %v1472, 2
        %v1474 = vmax.f32 %v1472, %v1473
        %v1475 = vrot.slane %v1474, 1
        %v1476 = vmax.f32 %v1474, %v1475
        %v1477 = vsub.f32 %v1459, %v1476
        %v1478 = vsub.f32 %v1460, %v1476
        %v1479 = vsub.f32 %v1461, %v1476
        %v1480 = vsub.f32 %v1462, %v1476
        %v1481 = vmul.f32 %v1477, 1.442695
        %v1482 = vpow.pop %v1481
        %v1483 = vmul.f32 %v1478, 1.442695
        %v1484 = vpow.pop %v1483
        %v1485 = vmul.f32 %v1479, 1.442695
        %v1486 = vpow.pop %v1485
        %v1487 = vmul.f32 %v1480, 1.442695
        %v1488 = vpow.pop %v1487
        %v1489 = vsel %vm1463, %v1482, 0.0
        %v1490 = vsel %vm1463, %v1484, 0.0
        %v1491 = vadd.f32 %v1489, %v1490
        %v1492 = vsel %vm1463, %v1486, 0.0
        %v1493 = vadd.f32 %v1491, %v1492
        %v1494 = vsel %vm1463, %v1488, 0.0
        %v1495 = vadd.f32 %v1493, %v1494
        %v1496 = vrot.slane %v1495, 4
        %v1497 = vadd.f32 %v1495, %v1496
        %v1498 = vrot.slane %v1497, 2
        %v1499 = vadd.f32 %v1497, %v1498
        %v1500 = vrot.slane %v1499, 1
        %v1501 = vadd.f32 %v1499, %v1500
        %v1502 = vrcp.pop %v1501
        %v1503 = vmul.f32 %v1482, %v1502
        %v1504 = vmul.f32 %v1484, %v1502
        %v1505 = vmul.f32 %v1486, %v1502
        %v1506 = vmul.f32 %v1488, %v1502
        %s1507 = smul.u32 %s37, 16
        %s1508 = scalar_lea.vmem %s659, %s1507
        %v1509 = vld [vmem:[%s1508] sm:$0xff]
        %v1510 = vld [vmem:[%s1508 + $0x8] sm:$0xff]
        %v1511 = vld [vmem:[%s684] sm:$0xff]
        %v1512 = vld [vmem:[%s684 + $0x8] sm:$0xff]
        %v1513 = vld [vmem:[%s684 + $0x10] sm:$0xff]
        %v1514 = vld [vmem:[%s684 + $0x18] sm:$0xff]
        %v1516 = vsel %vm1463, %v1503, 0
        %v1519 = vsel %vm1463, %v1504, 0
        %v1522 = vsel %vm1463, %v1505, 0
        %v1525 = vsel %vm1463, %v1506, 0
        %1527 = vmatprep.subr.mxu0 0.0
        %1528 = vmatpush1.msra.mxu0 0.0
        %1529 = vmatprep.subr.mxu0 0.0
        %1530 = vmatpush1.msra.mxu0 0.0
        %1531 = vmatprep.subr.mxu0 0.0
        %1532 = vmatpush1.msra.mxu0 0.0
        %1533 = vmatprep.subr.mxu0 0.0
        %1534 = vmatpush1.msra.mxu0 0.0
        %1535 = vmatprep.subr.mxu0 0.0
        %1536 = vmatpush1.msra.mxu0 0.0
        %1537 = vmatprep.subr.mxu0 0.0
        %1538 = vmatpush1.msra.mxu0 0.0
        %1539 = vmatprep.subr.mxu0 0.0
        %1540 = vmatpush1.msra.mxu0 0.0
        %1541 = vmatprep.subr.mxu0 0.0
        %1542 = vmatpush1.msra.mxu0 0.0
        %1543 = vmatprep.subr.mxu0 0.0
        %1544 = vmatpush1.msra.mxu0 0.0
        %1545 = vmatprep.subr.mxu0 0.0
        %1546 = vmatpush1.msra.mxu0 0.0
        %1547 = vmatprep.subr.mxu0 0.0
        %1548 = vmatpush1.msra.mxu0 0.0
        %1549 = vmatprep.subr.mxu0 0.0
        %1550 = vmatpush1.msra.mxu0 0.0
        %1551 = vmatprep.subr.mxu0 0.0
        %1552 = vmatpush1.msra.mxu0 0.0
        %1553 = vmatprep.subr.mxu0 0.0
        %1554 = vmatpush1.msra.mxu0 0.0
        %1555 = vmatprep.subr.mxu0 0.0
        %1556 = vmatpush1.msra.mxu0 %v1510
        %1557 = vmatprep.subr.mxu0 0.0
        %1558 = vmatpush1.msra.mxu0 %v1509
        %1559 = vmatprep.subr.mxu0 0.0
        %1560 = vmatpush2.msra.mxu0 0.0
        %1561 = vmatprep.subr.mxu0 0.0
        %1562 = vmatpush2.msra.mxu0 0.0
        %1563 = vmatprep.subr.mxu0 0.0
        %1564 = vmatpush2.msra.mxu0 0.0
        %1565 = vmatprep.subr.mxu0 0.0
        %1566 = vmatpush2.msra.mxu0 0.0
        %1567 = vmatprep.subr.mxu0 0.0
        %1568 = vmatpush2.msra.mxu0 0.0
        %1569 = vmatprep.subr.mxu0 0.0
        %1570 = vmatpush2.msra.mxu0 0.0
        %1571 = vmatprep.subr.mxu0 0.0
        %1572 = vmatpush2.msra.mxu0 0.0
        %1573 = vmatprep.subr.mxu0 0.0
        %1574 = vmatpush2.msra.mxu0 0.0
        %1575 = vmatprep.subr.mxu0 0.0
        %1576 = vmatpush2.msra.mxu0 0.0
        %1577 = vmatprep.subr.mxu0 0.0
        %1578 = vmatpush2.msra.mxu0 0.0
        %1579 = vmatprep.subr.mxu0 0.0
        %1580 = vmatpush2.msra.mxu0 0.0
        %1581 = vmatprep.subr.mxu0 0.0
        %1582 = vmatpush2.msra.mxu0 0.0
        %1583 = vmatprep.subr.mxu0 0.0
        %1584 = vmatpush2.msra.mxu0 0.0
        %1585 = vmatprep.subr.mxu0 0.0
        %1586 = vmatpush2.msra.mxu0 0.0
        %1587 = vmatprep.subr.mxu0 0.0
        %1588 = vmatpush2.msra.mxu0 0.0
        %1589 = vmatprep.subr.mxu0 0.0
        %1590 = vmatpush2.msra.mxu0 0.0
        %1591 = vmatprep.mubr.f32.mxu0 0.0
        %1592 = vmatmul.mubr.f32.gmra.mxu0 %v1516
        %v1593 = vpop.f32.mrf.mxu0
        %v1594 = vadd.f32 0.0, %v1593
        %v1595 = vpop.f32.mrf.mxu0
        %1596 = vmatprep.mubr.f32.mxu0 0.0
        %1597 = vmatmul.mubr.f32.gmra.mxu0 %v1519
        %v1598 = vpop.f32.mrf.mxu0
        %v1599 = vadd.f32 0.0, %v1598
        %v1600 = vpop.f32.mrf.mxu0
        %1601 = vmatprep.mubr.f32.mxu0 0.0
        %1602 = vmatmul.mubr.f32.gmra.mxu0 %v1522
        %v1603 = vpop.f32.mrf.mxu0
        %v1604 = vadd.f32 0.0, %v1603
        %v1605 = vpop.f32.mrf.mxu0
        %1606 = vmatprep.mubr.f32.mxu0 0.0
        %1607 = vmatmul.mubr.f32.gmra.mxu0 %v1525
        %v1608 = vpop.f32.mrf.mxu0
        %v1609 = vadd.f32 0.0, %v1608
        %v1610 = vpop.f32.mrf.mxu0
        %1611 = vdwg.mxu0
        %v1612 = vadd.f32 %v1511, %v1594
        %v1613 = vadd.f32 %v1512, %v1599
        %v1614 = vadd.f32 %v1513, %v1604
        %v1615 = vadd.f32 %v1514, %v1609
        %1616 = vst.msk [vmem:[%s684] sm:$0xff] %vm1463, %v1612
        %1617 = vst.msk [vmem:[%s684 + $0x8] sm:$0xff] %vm1463, %v1613
        %1618 = vst.msk [vmem:[%s684 + $0x10] sm:$0xff] %vm1463, %v1614
        %1619 = vst.msk [vmem:[%s684 + $0x18] sm:$0xff] %vm1463, %v1615
        %v1621 = vlaneseq
        %v1622 = vshrl.u32 %v1621, 7
        %v1623 = vsub.s32 0, %v1622
        %v1624 = vrot.slane %v700, %v1623
        %v1625 = vlaneseq
        %v1626 = vshrl.u32 %v1625, 7
        %v1627 = vsub.s32 1, %v1626
        %v1628 = vrot.slane %v700, %v1627
        %v1631 = vmul.f32 %v1428, %v1624
        %v1632 = vmul.f32 %v1428, %v1628
        %v1633 = vmul.f32 %v1433, %v1624
        %v1634 = vmul.f32 %v1433, %v1628
        %v1635 = vmul.f32 %v1438, %v1624
        %v1636 = vmul.f32 %v1438, %v1628
        %v1637 = vmul.f32 %v1443, %v1624
        %v1638 = vmul.f32 %v1443, %v1628
        %v1639 = vmul.f32 %v1265, %v1631
        %v1640 = vmul.f32 %v1266, %v1632
        %v1641 = vmul.f32 %v1267, %v1633
        %v1642 = vmul.f32 %v1268, %v1634
        %v1643 = vmul.f32 %v1269, %v1635
        %v1644 = vmul.f32 %v1270, %v1636
        %v1645 = vmul.f32 %v1271, %v1637
        %v1646 = vmul.f32 %v1272, %v1638
        %v1647 = vpack.c.bf16 %v1641, %v1639
        %v1648 = vpack.c.bf16 %v1642, %v1640
        %v1649 = vpack.c.bf16 %v1645, %v1643
        %v1650 = vpack.c.bf16 %v1646, %v1644
        %v1655 = vunpack.c.l.b16 %v1647
        %v1656 = vunpack.c.l.b16 %v1648
        %v1657 = vunpack.c.h.b16 %v1647
        %v1658 = vunpack.c.h.b16 %v1648
        %v1659 = vunpack.c.l.b16 %v1649
        %v1660 = vunpack.c.l.b16 %v1650
        %v1661 = vunpack.c.h.b16 %v1649
        %v1662 = vunpack.c.h.b16 %v1650
        %v1663 = vpack.c.b16 %v1656, %v1655
        %v1664 = vpack.c.b16 %v1658, %v1657
        %v1665 = vpack.c.b16 %v1660, %v1659
        %v1666 = vpack.c.b16 %v1662, %v1661
        %1671 = vst [vmem:[%s633] sm:$0xff] %v1663
        %1672 = vst [vmem:[%s633 + $0x8] sm:$0xff] %v1664
        %1673 = vst [vmem:[%s633 + $0x10] sm:$0xff] %v1665
        %1674 = vst [vmem:[%s633 + $0x18] sm:$0xff] %v1666
        %p1675 = scmp.eq.s32.totalorder %s37, 1
        // Predicated region
        $region81: #{tpu_custom_call.1} parent=67 // pred_check
          %p1676 = pneg %p1675
        $region82: #{tpu_custom_call.1} parent=67 // pred_check_branch
          %1678 = sbr.rel (%p1676) target = $region84
        $region83: #{tpu_custom_call.1} parent=67 // pred_region
          %v1679 = vld [vmem:[%s684] sm:$0xff]
          %v1680 = vld [vmem:[%s684 + $0x8] sm:$0xff]
          %v1681 = vld [vmem:[%s684 + $0x10] sm:$0xff]
          %v1682 = vld [vmem:[%s684 + $0x18] sm:$0xff]
          %v1683 = vmul.f32 %v1679, %v1428
          %v1684 = vmul.f32 %v1680, %v1433
          %v1685 = vmul.f32 %v1681, %v1438
          %v1686 = vmul.f32 %v1682, %v1443
          %1687 = vst.msk [vmem:[%s684] sm:$0xff] %vm1463, %v1683
          %1688 = vst.msk [vmem:[%s684 + $0x8] sm:$0xff] %vm1463, %v1684
          %1689 = vst.msk [vmem:[%s684 + $0x10] sm:$0xff] %vm1463, %v1685
          %1690 = vst.msk [vmem:[%s684 + $0x18] sm:$0xff] %vm1463, %v1686
        $region84: #{tpu_custom_call.1} parent=67 // pred_fallthru
          _
        %p1691 = scmp.lt.s32.totalorder %s36, 1
        %s1692 = scalar_select %p1691, %s36, 1
        %s1693 = smul.addr %s1692, 4
        %s1694 = smul.addr %s1693, 8
        %s1695 = scalar_lea.vmem %s12, %s1694
        %s1696 = sand.u32 %s383, 1
        %s1697 = scalar_lea.sflag [#allocation4], %s1696
        %s1698 = sand.u32 %s383, 1
        %s1699 = smul.addr %s1698, 32
        %s1700 = scalar_lea.vmem [#allocation7], %s1699
        // Predicated region
        $region85: #{tpu_custom_call.1} parent=67 // pred_check
          %p1701 = pneg %p365
        $region86: #{tpu_custom_call.1} parent=67 // pred_check_branch
          %1703 = sbr.rel (%p1701) target = $region88
        $region87: #{tpu_custom_call.1} parent=67 // pred_region
          _
        $region88: #{tpu_custom_call.1} parent=67 // pred_fallthru
          _
        // Predicated region
        $region89: #{tpu_custom_call.1} parent=67 // pred_check
          %p1704 = pneg %p393
        $region90: #{tpu_custom_call.1} parent=67 // pred_check_branch
          %1706 = sbr.rel (%p1704) target = $region92
        $region91: #{tpu_custom_call.1} parent=67 // pred_region
          %s1707 = smul.u32 2, %s37
          %s1709 = ssub.s32 512, 512
          %1710 = vsyncadd %s1697, %s1709
          %s1711 = smul.addr %s36, 16
          %s1712 = sadd.s32 %s1707, %s1711
          %s1713 = smul.addr %s1712, 64
          %s1714 = scalar_lea.hbm %s13, %s1713
          %s1715 = sshll.u32 %s1700, 4
          %s1716 = int_to_ptr.vmem [resolvable:$true] %s1715
          %1721 = dma.vmem_to_hbm [thread:$0]  %s1716, 512, %s1714, %s1697, 128, 256, 8
        $region92: #{tpu_custom_call.1} parent=67 // pred_fallthru
          _
      $region68: #{tpu_custom_call.1} parent=5 // pred_fallthru
        _
      %p1722 = scmp.le.s32.totalorder 2, %s27
      // Predicated region
      $region93: #{tpu_custom_call.1} parent=5 // pred_check
        %p1723 = pneg %p1722
      $region94: #{tpu_custom_call.1} parent=5 // pred_check_branch
        %1725 = sbr.rel (%p1723) target = $region96
      $region95: #{tpu_custom_call.1} parent=5 // pred_region
        %s1726 = ssub.s32 %s27, 2
        // Predicated region
        $region97: #{tpu_custom_call.1} parent=95 // pred_check
          %p1727 = pneg %p371
        $region98: #{tpu_custom_call.1} parent=95 // pred_check_branch
          %1729 = sbr.rel (%p1727) target = $region100
        $region99: #{tpu_custom_call.1} parent=95 // pred_region
          %p1730 = scmp.lt.s32.totalorder %s38, 1
          %s1731 = scalar_select %p1730, %s38, 1
          %s1732 = smul.addr %s1731, 4
          %s1733 = smul.addr %s1732, 8
          %s1734 = scalar_lea.vmem %s12, %s1733
        $region100: #{tpu_custom_call.1} parent=95 // pred_fallthru
          _
        // Predicated region
        $region101: #{tpu_custom_call.1} parent=95 // pred_check
          %p1735 = pneg %p399
        $region102: #{tpu_custom_call.1} parent=95 // pred_check_branch
          %1737 = sbr.rel (%p1735) target = $region104
        $region103: #{tpu_custom_call.1} parent=95 // pred_region
          %s1738 = sand.u32 %s384, 1
          %s1739 = scalar_lea.sflag [#allocation4], %s1738
          %s1740 = sand.u32 %s384, 1
          %s1741 = smul.addr %s1740, 32
          %s1742 = scalar_lea.vmem [#allocation7], %s1741
          %1743 = dma.done %s1739, 512
        $region104: #{tpu_custom_call.1} parent=95 // pred_fallthru
          _
      $region96: #{tpu_custom_call.1} parent=5 // pred_fallthru
        _
    $region6: #{tpu_custom_call.1} parent=1 // loop_footer
      %s31 = sadd.s32 1, %s27
    $region7: #{tpu_custom_call.1} parent=1 // loop_footer_branch
      %26 = sbr.rel target = $region3
    $region8: #{tpu_custom_call.1} parent=1 // loop_exit
      _
    %1744 = vsyncpa [#allocation3], 1
    %s1745 = scalar_lea.sflag [#allocation3], 1
    %1746 = vsyncpa %s1745, 1
    %1747 = vsyncpa [#allocation6], 1
    %1748 = vsyncpa [#allocation4], 1
    %s1749 = scalar_lea.sflag [#allocation4], 1
    %1750 = vsyncpa %s1749, 1

</llo_original>
